<compile_context>
chip_gen: v6e
topology: v6e:2x2x1
jax: 0.10.0
libtpu: 0.0.40
codegen_flags: <defaults>
</compile_context>

<pallas_src>
import numpy as np
import jax
import jax.numpy as jnp
from jax.experimental import pallas as pl
from jax.experimental.pallas import tpu as pltpu

# ---- sizes (small, deterministic) ----
B = 4     # batch
T = 6     # decoder sequence length
S = 8     # encoder (context) length
E = 16    # embed size
H = 32    # hidden size
V = 40    # vocab size
VP = 128  # vocab padded to a full lane tile (lane-dense logit store)
L = 2     # num GRU layers

# weight-slab column offsets (all 128-lane aligned blocks)
_WHB = 0      # [wh0 | 0 | wh1]  width 224 (wh1 starts at 128 so gh1 is lane-aligned)
_WI1 = 256    # wi1              width 96
_WGS = 384    # [wgo | wso]      width 64
_WGC = 512    # wgc              width 32
_WSW = 640    # wsw              width 32
_WOUT = 768   # wout (V cols)    width 128
_WH_COLS = 896


def att_gate_decoder_kernel(
    emb_ref,    # (T*B, E)   time-major flattened embeddings (row = t*B + b)
    h_ref,      # (2B, H)    initial hidden, rows 0:B layer0, B:2B layer1
    ctxm_ref,   # (B, S, H)  pre-masked encoder context (binary mask * context)
    wh_ref,     # (H, 896)   packed H-row weight slab (see offsets above)
    we_ref,     # (E, 128)   [wi0 | we]
    bias_ref,   # (8, 256)   packed biases
    out_ref,    # (T*B, VP)  logits, row t*B + b
    out_scr,    # VMEM (T*B, H) scratch: per-step top-layer outputs
):
  f32 = jnp.float32
  H2, H3 = 2 * H, 3 * H

  emb_flat = emb_ref[...]                          # (T*B, E)
  ctx_m = ctxm_ref[...]                            # (B, S, H)

  # ---- loop-invariant hoists (computed once, not per time step) ----
  # (a) fused embedding projections: layer-0 gates for ALL steps + readout emb term.
  ew = jnp.dot(emb_flat, we_ref[...], preferred_element_type=f32)     # (T*B, 128)
  gi0_all = ew[:, :H3] + bias_ref[0:1, :H3]                           # (T*B, 3H)
  we_term = ew[:, H3:H3 + H]                                          # (T*B, H)

  # (b) context half of the attentive gate (+ its bias)
  ctx_proj = (jnp.dot(ctx_m.reshape(B * S, H), wh_ref[:, _WGC:_WGC + H],
                      preferred_element_type=f32)
              + bias_ref[3:4, :H]).reshape(B, S, H)                   # (B, S, H)

  # (c) loop weights + per-step biases pre-broadcast ONCE (broadcasts are not CSE'd)
  whb = wh_ref[:, _WHB:_WHB + 224]                                    # [wh0 | 0 | wh1]
  wi1 = wh_ref[:, _WI1:_WI1 + H3]
  bi1_b = jnp.broadcast_to(bias_ref[1:2, :H3], (B, H3))               # layer-1 input bias
  ghb_b = jnp.broadcast_to(bias_ref[2:3, :224], (2 * B, 224))         # hidden "n" biases

  def gru_update(gi, gh, h):
    # PyTorch GRUCell order [r,z,n]; bi+bh folded into gi for r,z; bh_n folded into gh.
    s = gi + gh
    rz = jax.nn.sigmoid(s[:, :H2])                  # fused r/z sigmoid
    r = rz[:, :H]
    z = rz[:, H:H2]
    n = jnp.tanh(gi[:, H2:] + r * gh[:, H2:])
    return n + z * (h - n)                          # == (1-z)*n + z*h

  h_stack = h_ref[...]                              # (2B, H)
  # T is small & static: fully unrolled recurrence (scheduler sees the whole chain).
  for t in range(T):
    # ONE fused MXU push for BOTH hidden-state projections of this step.
    gh_all = jnp.dot(h_stack, whb, preferred_element_type=f32) + ghb_b   # (2B, 224)
    h0_new = gru_update(gi0_all[t * B:(t + 1) * B], gh_all[:B, :H3], h_stack[:B])
    gi1 = jnp.dot(h0_new, wi1, preferred_element_type=f32) + bi1_b       # (B, 3H)
    h1_new = gru_update(gi1, gh_all[B:, 128:128 + H3], h_stack[B:])
    out_scr[t * B:(t + 1) * B, :] = h1_new          # spill to VMEM; keep vregs free
    h_stack = jnp.concatenate([h0_new, h1_new], axis=0)

  # ---- post-loop: attentive gate + readout + vocab projection (off the chain) ----
  out_flat = out_scr[...]                                              # (T*B, H)
  go_so = jnp.dot(out_flat, wh_ref[:, _WGS:_WGS + H2],
                  preferred_element_type=f32)                          # (T*B, 2H)
  out_part = go_so[:, :H]                                              # out @ wgo
  so_term = go_so[:, H:H2]                                             # out @ wso

  # gate over the (pre-masked) context, batched over ALL T steps
  gate = jax.nn.sigmoid(out_part[:, None, :] + jnp.tile(ctx_proj, (T, 1, 1)))  # (T*B,S,H)
  w_flat = jnp.sum(gate * jnp.tile(ctx_m, (T, 1, 1)), axis=1)                  # (T*B,H)

  # readout via accumulated dots (no lane-axis concat), then lane-dense logit store
  readout = jnp.tanh(so_term + we_term + bias_ref[4:5, :H]
                     + jnp.dot(w_flat, wh_ref[:, _WSW:_WSW + H],
                               preferred_element_type=f32))
  out_ref[...] = (jnp.dot(readout, wh_ref[:, _WOUT:_WOUT + VP],
                          preferred_element_type=f32) + bias_ref[5:6, :VP])


def pack_params(p):
  """One-time parameter packing (hoisted out of the per-call forward path)."""
  H3 = 3 * H

  def pack3(w):  # (3, in, H) -> (in, 3H), gate order [r, z, n]
    return jnp.concatenate([w[0], w[1], w[2]], axis=1)

  wi0, wh0 = pack3(p['wi0']), pack3(p['wh0'])
  wi1, wh1 = pack3(p['wi1']), pack3(p['wh1'])

  # emb-row slab: [wi0 | we]
  w_e = jnp.zeros((E, 128), jnp.float32)
  w_e = w_e.at[:, :H3].set(wi0)
  w_e = w_e.at[:, H3:H3 + H].set(p['we'])

  # H-row slab (all blocks lane-aligned)
  w_h = jnp.zeros((H, _WH_COLS), jnp.float32)
  w_h = w_h.at[:, 0:H3].set(wh0)
  w_h = w_h.at[:, 128:128 + H3].set(wh1)
  w_h = w_h.at[:, _WI1:_WI1 + H3].set(wi1)
  w_h = w_h.at[:, _WGS:_WGS + H].set(p['wgo'])
  w_h = w_h.at[:, _WGS + H:_WGS + 2 * H].set(p['wso'])
  w_h = w_h.at[:, _WGC:_WGC + H].set(p['wgc'])
  w_h = w_h.at[:, _WSW:_WSW + H].set(p['wsw'])
  w_h = w_h.at[:, _WOUT:_WOUT + V].set(p['wout'])

  # bias blob
  bias = jnp.zeros((8, 256), jnp.float32)
  # row 0: layer-0 input bias with hidden r,z biases folded; n input bias plain
  bias = bias.at[0, 0:H].set(p['bi0'][0, 0] + p['bh0'][0, 0])
  bias = bias.at[0, H:2 * H].set(p['bi0'][1, 0] + p['bh0'][1, 0])
  bias = bias.at[0, 2 * H:3 * H].set(p['bi0'][2, 0])
  # row 1: same for layer 1
  bias = bias.at[1, 0:H].set(p['bi1'][0, 0] + p['bh1'][0, 0])
  bias = bias.at[1, H:2 * H].set(p['bi1'][1, 0] + p['bh1'][1, 0])
  bias = bias.at[1, 2 * H:3 * H].set(p['bi1'][2, 0])
  # row 2: hidden "n" biases at their positions inside the fused (2B,224) gh result
  bias = bias.at[2, 2 * H:3 * H].set(p['bh0'][2, 0])
  bias = bias.at[2, 128 + 2 * H:128 + 3 * H].set(p['bh1'][2, 0])
  # row 3: bg, row 4: bs, row 5: bout (padded to VP)
  bias = bias.at[3, 0:H].set(p['bg'][0])
  bias = bias.at[4, 0:H].set(p['bs'][0])
  bias = bias.at[5, 0:V].set(p['bout'][0])

  return {'embedding': p['embedding'], 'w_e': w_e, 'w_h': w_h, 'bias': bias}


def att_gate_decoder_forward(tokens, h0, context, context_lengths, packed):
  """Per-call forward (teacher forcing); returns logits (B, T, V)."""
  emb = jnp.take(packed['embedding'], tokens, axis=0)                 # (B, T, E)
  emb_flat = jnp.transpose(emb, (1, 0, 2)).reshape(T * B, E)          # (T*B, E)
  # binary {0,1} sequence mask pre-multiplied into the context (identity holds only
  # because the mask is strictly 0/1).
  mask = (jnp.arange(S)[None, :] < context_lengths[:, None]).astype(jnp.float32)
  ctx_m = context * mask[:, :, None]                                  # (B, S, H)
  h_init = h0.reshape(2 * B, H)                                       # (2B, H)

  vmem = pl.BlockSpec(memory_space=pltpu.MemorySpace.VMEM)
  logits_pad = pl.pallas_call(
      att_gate_decoder_kernel,
      out_shape=jax.ShapeDtypeStruct((T * B, VP), jnp.float32),
      in_specs=[vmem] * 6,
      out_specs=vmem,
      scratch_shapes=[pltpu.VMEM((T * B, H), jnp.float32)],
      cost_estimate=pl.CostEstimate(flops=1_400_000, transcendentals=12_000,
                                    bytes_accessed=160_000),
  )(emb_flat, h_init, ctx_m, packed['w_h'], packed['w_e'], packed['bias'])

  logits = logits_pad[:, :V].reshape(T, B, V)      # drop lane padding, un-flatten time
  return jnp.transpose(logits, (1, 0, 2))          # (B, T, V)


def reference_forward(tokens, h0, context, context_lengths, p):
  """Pure-JAX reference with the original module's semantics (correctness check)."""
  embedded = jnp.take(p['embedding'], tokens, axis=0)                 # (B, T, E)
  mask = (jnp.arange(S)[None, :] < context_lengths[:, None]).astype(jnp.float32)

  def gru_cell(x, h, wi, wh, bi, bh):
    r = jax.nn.sigmoid(x @ wi[0] + bi[0] + h @ wh[0] + bh[0])
    z = jax.nn.sigmoid(x @ wi[1] + bi[1] + h @ wh[1] + bh[1])
    n = jnp.tanh(x @ wi[2] + bi[2] + r * (h @ wh[2] + bh[2]))
    return (1.0 - z) * n + z * h

  def step(h, x):
    h0n = gru_cell(x, h[0], p['wi0'], p['wh0'], p['bi0'], p['bh0'])
    h1n = gru_cell(h0n, h[1], p['wi1'], p['wh1'], p['bi1'], p['bh1'])
    out = h1n
    out_part = out @ p['wgo']
    ctx_part = jnp.einsum('bsh,hk->bsk', context, p['wgc'])
    gate = jax.nn.sigmoid(out_part[:, None, :] + ctx_part + p['bg'][None])
    gate = gate * mask[:, :, None]
    weighted = jnp.sum(gate * context, axis=1)
    readout = jnp.tanh(out @ p['wso'] + weighted @ p['wsw'] + x @ p['we'] + p['bs'])
    logit = readout @ p['wout'] + p['bout']
    return jnp.stack([h0n, h1n]), logit

  _, logits = jax.lax.scan(step, h0, jnp.transpose(embedded, (1, 0, 2)))
  return jnp.transpose(logits, (1, 0, 2))          # (B, T, V)


if __name__ == "__main__":
  key = jax.random.PRNGKey(0)
  ks = jax.random.split(key, 32)
  sc = 0.1

  def rnd(i, shape):
    return (sc * jax.random.normal(ks[i], shape)).astype(jnp.float32)

  params = {
      'embedding': rnd(0, (V, E)),
      # GRU layer 0
      'wi0': rnd(1, (3, E, H)), 'wh0': rnd(2, (3, H, H)),
      'bi0': rnd(3, (3, 1, H)), 'bh0': rnd(4, (3, 1, H)),
      # GRU layer 1
      'wi1': rnd(5, (3, H, H)), 'wh1': rnd(6, (3, H, H)),
      'bi1': rnd(7, (3, 1, H)), 'bh1': rnd(8, (3, 1, H)),
      # AttentiveGate (Linear(2H -> H) split into output-half / context-half)
      'wgo': rnd(9, (H, H)), 'wgc': rnd(10, (H, H)), 'bg': rnd(11, (1, H)),
      # ScoreLayer 'readout'
      'wso': rnd(12, (H, H)), 'wsw': rnd(13, (H, H)), 'we': rnd(14, (E, H)),
      'bs': rnd(15, (1, H)),
      'wout': rnd(16, (H, V)), 'bout': rnd(17, (1, V)),
  }

  tokens = jax.random.randint(ks[20], (B, T), 0, V, dtype=jnp.int32)
  h0 = rnd(21, (L, B, H))
  context = rnd(22, (B, S, H))
  context_lengths = jnp.array([S, 5, S, 3], dtype=jnp.int32)

  packed = pack_params(params)        # one-time parameter packing (not per call)
  fwd = jax.jit(att_gate_decoder_forward)

  out = jax.block_until_ready(fwd(tokens, h0, context, context_lengths, packed))
  ref = jax.block_until_ready(
      reference_forward(tokens, h0, context, context_lengths, params))

  assert out.shape == (B, T, V), out.shape
  np.testing.assert_allclose(np.asarray(out), np.asarray(ref), atol=2e-2, rtol=2e-2)
  print("KERNEL_OK")
</pallas_src>

<mosaic_0001>
module attributes {stable_mosaic.version = 11 : i64} {
  func.func @att_gate_decoder_kernel(%arg0: memref<24x16xf32, #tpu.memory_space<vmem>>, %arg1: memref<8x32xf32, #tpu.memory_space<vmem>>, %arg2: memref<4x8x32xf32, #tpu.memory_space<vmem>>, %arg3: memref<32x896xf32, #tpu.memory_space<vmem>>, %arg4: memref<16x128xf32, #tpu.memory_space<vmem>>, %arg5: memref<8x256xf32, #tpu.memory_space<vmem>>, %arg6: memref<24x128xf32, #tpu.memory_space<vmem>>, %arg7: memref<24x32xf32, #tpu.memory_space<vmem>>) attributes {dimension_semantics = [], scalar_prefetch = 0 : i64, scratch_operands = 1 : i64, tpu.core_type = #tpu.core_type<tc>} {
    %c0 = arith.constant 0 : index
    %c0_0 = arith.constant 0 : index
    %0 = vector.load %arg0[%c0, %c0_0] : memref<24x16xf32, #tpu.memory_space<vmem>>, vector<24x16xf32>
    %c0_1 = arith.constant 0 : index
    %c0_2 = arith.constant 0 : index
    %c0_3 = arith.constant 0 : index
    %1 = vector.load %arg2[%c0_1, %c0_2, %c0_3] : memref<4x8x32xf32, #tpu.memory_space<vmem>>, vector<4x8x32xf32>
    %c0_4 = arith.constant 0 : index
    %c0_5 = arith.constant 0 : index
    %2 = vector.load %arg4[%c0_4, %c0_5] : memref<16x128xf32, #tpu.memory_space<vmem>>, vector<16x128xf32>
    %cst = arith.constant dense<0.000000e+00> : vector<24x128xf32>
    %3 = tpu.matmul %0, %2, %cst {dimension_numbers = #tpu.dot_dimension_numbers<[1], [0], [0], [1], [0, 0, 1, 1], [], []>} : vector<24x16xf32>, vector<16x128xf32>, vector<24x128xf32> -> vector<24x128xf32>
    %4 = vector.extract_strided_slice %3 {offsets = [0, 0], sizes = [24, 96], strides = [1, 1]} : vector<24x128xf32> to vector<24x96xf32>
    %c0_6 = arith.constant 0 : index
    %c0_7 = arith.constant 0 : index
    %5 = vector.load %arg5[%c0_6, %c0_7] : memref<8x256xf32, #tpu.memory_space<vmem>>, vector<1x96xf32>
    %6 = vector.broadcast %5 : vector<1x96xf32> to vector<24x96xf32>
    %7 = arith.addf %4, %6 : vector<24x96xf32>
    %8 = vector.extract_strided_slice %3 {offsets = [0, 96], sizes = [24, 32], strides = [1, 1]} : vector<24x128xf32> to vector<24x32xf32>
    %9 = vector.shape_cast %1 : vector<4x8x32xf32> to vector<32x32xf32>
    %c0_8 = arith.constant 0 : index
    %c512 = arith.constant 512 : index
    %10 = vector.load %arg3[%c0_8, %c512] : memref<32x896xf32, #tpu.memory_space<vmem>>, vector<32x32xf32>
    %cst_9 = arith.constant dense<0.000000e+00> : vector<32x32xf32>
    %11 = tpu.matmul %9, %10, %cst_9 {dimension_numbers = #tpu.dot_dimension_numbers<[1], [0], [0], [1], [0, 0, 1, 1], [], []>} : vector<32x32xf32>, vector<32x32xf32>, vector<32x32xf32> -> vector<32x32xf32>
    %c3 = arith.constant 3 : index
    %c0_10 = arith.constant 0 : index
    %12 = vector.load %arg5[%c3, %c0_10] : memref<8x256xf32, #tpu.memory_space<vmem>>, vector<1x32xf32>
    %13 = vector.broadcast %12 : vector<1x32xf32> to vector<32x32xf32>
    %14 = arith.addf %11, %13 : vector<32x32xf32>
    %15 = vector.shape_cast %14 : vector<32x32xf32> to vector<4x8x32xf32>
    %c0_11 = arith.constant 0 : index
    %c0_12 = arith.constant 0 : index
    %16 = vector.load %arg3[%c0_11, %c0_12] : memref<32x896xf32, #tpu.memory_space<vmem>>, vector<32x224xf32>
    %c0_13 = arith.constant 0 : index
    %c256 = arith.constant 256 : index
    %17 = vector.load %arg3[%c0_13, %c256] : memref<32x896xf32, #tpu.memory_space<vmem>>, vector<32x96xf32>
    %c1 = arith.constant 1 : index
    %c0_14 = arith.constant 0 : index
    %18 = vector.load %arg5[%c1, %c0_14] : memref<8x256xf32, #tpu.memory_space<vmem>>, vector<1x96xf32>
    %19 = vector.shape_cast %18 : vector<1x96xf32> to vector<1x96xf32>
    %20 = vector.broadcast %19 : vector<1x96xf32> to vector<4x96xf32>
    %c2 = arith.constant 2 : index
    %c0_15 = arith.constant 0 : index
    %21 = vector.load %arg5[%c2, %c0_15] : memref<8x256xf32, #tpu.memory_space<vmem>>, vector<1x224xf32>
    %22 = vector.shape_cast %21 : vector<1x224xf32> to vector<1x224xf32>
    %23 = vector.broadcast %22 : vector<1x224xf32> to vector<8x224xf32>
    %c0_16 = arith.constant 0 : index
    %c0_17 = arith.constant 0 : index
    %24 = vector.load %arg1[%c0_16, %c0_17] : memref<8x32xf32, #tpu.memory_space<vmem>>, vector<8x32xf32>
    %cst_18 = arith.constant dense<0.000000e+00> : vector<8x224xf32>
    %25 = tpu.matmul %24, %16, %cst_18 {dimension_numbers = #tpu.dot_dimension_numbers<[1], [0], [0], [1], [0, 0, 1, 1], [], []>} : vector<8x32xf32>, vector<32x224xf32>, vector<8x224xf32> -> vector<8x224xf32>
    %26 = arith.addf %25, %23 : vector<8x224xf32>
    %27 = vector.extract_strided_slice %7 {offsets = [0, 0], sizes = [4, 96], strides = [1, 1]} : vector<24x96xf32> to vector<4x96xf32>
    %28 = vector.extract_strided_slice %26 {offsets = [0, 0], sizes = [4, 96], strides = [1, 1]} : vector<8x224xf32> to vector<4x96xf32>
    %29 = vector.extract_strided_slice %24 {offsets = [0, 0], sizes = [4, 32], strides = [1, 1]} : vector<8x32xf32> to vector<4x32xf32>
    %30 = arith.addf %27, %28 : vector<4x96xf32>
    %31 = vector.extract_strided_slice %30 {offsets = [0, 0], sizes = [4, 64], strides = [1, 1]} : vector<4x96xf32> to vector<4x64xf32>
    %32 = arith.negf %31 : vector<4x64xf32>
    %33 = math.exp %32 : vector<4x64xf32>
    %cst_19 = arith.constant 1.000000e+00 : f32
    %34 = vector.broadcast %cst_19 : f32 to vector<4x64xf32>
    %35 = arith.addf %34, %33 : vector<4x64xf32>
    %36 = arith.divf %34, %35 : vector<4x64xf32>
    %37 = vector.extract_strided_slice %36 {offsets = [0, 0], sizes = [4, 32], strides = [1, 1]} : vector<4x64xf32> to vector<4x32xf32>
    %38 = vector.extract_strided_slice %36 {offsets = [0, 32], sizes = [4, 32], strides = [1, 1]} : vector<4x64xf32> to vector<4x32xf32>
    %39 = vector.extract_strided_slice %27 {offsets = [0, 64], sizes = [4, 32], strides = [1, 1]} : vector<4x96xf32> to vector<4x32xf32>
    %40 = vector.extract_strided_slice %28 {offsets = [0, 64], sizes = [4, 32], strides = [1, 1]} : vector<4x96xf32> to vector<4x32xf32>
    %41 = arith.mulf %37, %40 : vector<4x32xf32>
    %42 = arith.addf %39, %41 : vector<4x32xf32>
    %43 = math.tanh %42 : vector<4x32xf32>
    %44 = arith.subf %29, %43 : vector<4x32xf32>
    %45 = arith.mulf %38, %44 : vector<4x32xf32>
    %46 = arith.addf %43, %45 : vector<4x32xf32>
    %cst_20 = arith.constant dense<0.000000e+00> : vector<4x96xf32>
    %47 = tpu.matmul %46, %17, %cst_20 {dimension_numbers = #tpu.dot_dimension_numbers<[1], [0], [0], [1], [0, 0, 1, 1], [], []>} : vector<4x32xf32>, vector<32x96xf32>, vector<4x96xf32> -> vector<4x96xf32>
    %48 = arith.addf %47, %20 : vector<4x96xf32>
    %49 = vector.extract_strided_slice %26 {offsets = [4, 128], sizes = [4, 96], strides = [1, 1]} : vector<8x224xf32> to vector<4x96xf32>
    %50 = vector.extract_strided_slice %24 {offsets = [4, 0], sizes = [4, 32], strides = [1, 1]} : vector<8x32xf32> to vector<4x32xf32>
    %51 = arith.addf %48, %49 : vector<4x96xf32>
    %52 = vector.extract_strided_slice %51 {offsets = [0, 0], sizes = [4, 64], strides = [1, 1]} : vector<4x96xf32> to vector<4x64xf32>
    %53 = arith.negf %52 : vector<4x64xf32>
    %54 = math.exp %53 : vector<4x64xf32>
    %cst_21 = arith.constant 1.000000e+00 : f32
    %55 = vector.broadcast %cst_21 : f32 to vector<4x64xf32>
    %56 = arith.addf %55, %54 : vector<4x64xf32>
    %57 = arith.divf %55, %56 : vector<4x64xf32>
    %58 = vector.extract_strided_slice %57 {offsets = [0, 0], sizes = [4, 32], strides = [1, 1]} : vector<4x64xf32> to vector<4x32xf32>
    %59 = vector.extract_strided_slice %57 {offsets = [0, 32], sizes = [4, 32], strides = [1, 1]} : vector<4x64xf32> to vector<4x32xf32>
    %60 = vector.extract_strided_slice %48 {offsets = [0, 64], sizes = [4, 32], strides = [1, 1]} : vector<4x96xf32> to vector<4x32xf32>
    %61 = vector.extract_strided_slice %49 {offsets = [0, 64], sizes = [4, 32], strides = [1, 1]} : vector<4x96xf32> to vector<4x32xf32>
    %62 = arith.mulf %58, %61 : vector<4x32xf32>
    %63 = arith.addf %60, %62 : vector<4x32xf32>
    %64 = math.tanh %63 : vector<4x32xf32>
    %65 = arith.subf %50, %64 : vector<4x32xf32>
    %66 = arith.mulf %59, %65 : vector<4x32xf32>
    %67 = arith.addf %64, %66 : vector<4x32xf32>
    %c0_22 = arith.constant 0 : index
    %c0_23 = arith.constant 0 : index
    %68 = vector.load %arg7[%c0_22, %c0_23] : memref<24x32xf32, #tpu.memory_space<vmem>>, vector<4x32xf32>
    tpu.vector_store %arg7[%c0_22, %c0_23], %67 {strides = array<i32>} : memref<24x32xf32, #tpu.memory_space<vmem>>, vector<4x32xf32>,
    %69 = tpu.concatenate %46, %67 in 0 : vector<4x32xf32>, vector<4x32xf32> -> vector<8x32xf32>
    %cst_24 = arith.constant dense<0.000000e+00> : vector<8x224xf32>
    %70 = tpu.matmul %69, %16, %cst_24 {dimension_numbers = #tpu.dot_dimension_numbers<[1], [0], [0], [1], [0, 0, 1, 1], [], []>} : vector<8x32xf32>, vector<32x224xf32>, vector<8x224xf32> -> vector<8x224xf32>
    %71 = arith.addf %70, %23 : vector<8x224xf32>
    %72 = vector.extract_strided_slice %7 {offsets = [4, 0], sizes = [4, 96], strides = [1, 1]} : vector<24x96xf32> to vector<4x96xf32>
    %73 = vector.extract_strided_slice %71 {offsets = [0, 0], sizes = [4, 96], strides = [1, 1]} : vector<8x224xf32> to vector<4x96xf32>
    %74 = vector.extract_strided_slice %69 {offsets = [0, 0], sizes = [4, 32], strides = [1, 1]} : vector<8x32xf32> to vector<4x32xf32>
    %75 = arith.addf %72, %73 : vector<4x96xf32>
    %76 = vector.extract_strided_slice %75 {offsets = [0, 0], sizes = [4, 64], strides = [1, 1]} : vector<4x96xf32> to vector<4x64xf32>
    %77 = arith.negf %76 : vector<4x64xf32>
    %78 = math.exp %77 : vector<4x64xf32>
    %cst_25 = arith.constant 1.000000e+00 : f32
    %79 = vector.broadcast %cst_25 : f32 to vector<4x64xf32>
    %80 = arith.addf %79, %78 : vector<4x64xf32>
    %81 = arith.divf %79, %80 : vector<4x64xf32>
    %82 = vector.extract_strided_slice %81 {offsets = [0, 0], sizes = [4, 32], strides = [1, 1]} : vector<4x64xf32> to vector<4x32xf32>
    %83 = vector.extract_strided_slice %81 {offsets = [0, 32], sizes = [4, 32], strides = [1, 1]} : vector<4x64xf32> to vector<4x32xf32>
    %84 = vector.extract_strided_slice %72 {offsets = [0, 64], sizes = [4, 32], strides = [1, 1]} : vector<4x96xf32> to vector<4x32xf32>
    %85 = vector.extract_strided_slice %73 {offsets = [0, 64], sizes = [4, 32], strides = [1, 1]} : vector<4x96xf32> to vector<4x32xf32>
    %86 = arith.mulf %82, %85 : vector<4x32xf32>
    %87 = arith.addf %84, %86 : vector<4x32xf32>
    %88 = math.tanh %87 : vector<4x32xf32>
    %89 = arith.subf %74, %88 : vector<4x32xf32>
    %90 = arith.mulf %83, %89 : vector<4x32xf32>
    %91 = arith.addf %88, %90 : vector<4x32xf32>
    %cst_26 = arith.constant dense<0.000000e+00> : vector<4x96xf32>
    %92 = tpu.matmul %91, %17, %cst_26 {dimension_numbers = #tpu.dot_dimension_numbers<[1], [0], [0], [1], [0, 0, 1, 1], [], []>} : vector<4x32xf32>, vector<32x96xf32>, vector<4x96xf32> -> vector<4x96xf32>
    %93 = arith.addf %92, %20 : vector<4x96xf32>
    %94 = vector.extract_strided_slice %71 {offsets = [4, 128], sizes = [4, 96], strides = [1, 1]} : vector<8x224xf32> to vector<4x96xf32>
    %95 = vector.extract_strided_slice %69 {offsets = [4, 0], sizes = [4, 32], strides = [1, 1]} : vector<8x32xf32> to vector<4x32xf32>
    %96 = arith.addf %93, %94 : vector<4x96xf32>
    %97 = vector.extract_strided_slice %96 {offsets = [0, 0], sizes = [4, 64], strides = [1, 1]} : vector<4x96xf32> to vector<4x64xf32>
    %98 = arith.negf %97 : vector<4x64xf32>
    %99 = math.exp %98 : vector<4x64xf32>
    %cst_27 = arith.constant 1.000000e+00 : f32
    %100 = vector.broadcast %cst_27 : f32 to vector<4x64xf32>
    %101 = arith.addf %100, %99 : vector<4x64xf32>
    %102 = arith.divf %100, %101 : vector<4x64xf32>
    %103 = vector.extract_strided_slice %102 {offsets = [0, 0], sizes = [4, 32], strides = [1, 1]} : vector<4x64xf32> to vector<4x32xf32>
    %104 = vector.extract_strided_slice %102 {offsets = [0, 32], sizes = [4, 32], strides = [1, 1]} : vector<4x64xf32> to vector<4x32xf32>
    %105 = vector.extract_strided_slice %93 {offsets = [0, 64], sizes = [4, 32], strides = [1, 1]} : vector<4x96xf32> to vector<4x32xf32>
    %106 = vector.extract_strided_slice %94 {offsets = [0, 64], sizes = [4, 32], strides = [1, 1]} : vector<4x96xf32> to vector<4x32xf32>
    %107 = arith.mulf %103, %106 : vector<4x32xf32>
    %108 = arith.addf %105, %107 : vector<4x32xf32>
    %109 = math.tanh %108 : vector<4x32xf32>
    %110 = arith.subf %95, %109 : vector<4x32xf32>
    %111 = arith.mulf %104, %110 : vector<4x32xf32>
    %112 = arith.addf %109, %111 : vector<4x32xf32>
    %c4 = arith.constant 4 : index
    %c0_28 = arith.constant 0 : index
    %113 = vector.load %arg7[%c4, %c0_28] : memref<24x32xf32, #tpu.memory_space<vmem>>, vector<4x32xf32>
    tpu.vector_store %arg7[%c4, %c0_28], %112 {strides = array<i32>} : memref<24x32xf32, #tpu.memory_space<vmem>>, vector<4x32xf32>,
    %114 = tpu.concatenate %91, %112 in 0 : vector<4x32xf32>, vector<4x32xf32> -> vector<8x32xf32>
    %cst_29 = arith.constant dense<0.000000e+00> : vector<8x224xf32>
    %115 = tpu.matmul %114, %16, %cst_29 {dimension_numbers = #tpu.dot_dimension_numbers<[1], [0], [0], [1], [0, 0, 1, 1], [], []>} : vector<8x32xf32>, vector<32x224xf32>, vector<8x224xf32> -> vector<8x224xf32>
    %116 = arith.addf %115, %23 : vector<8x224xf32>
    %117 = vector.extract_strided_slice %7 {offsets = [8, 0], sizes = [4, 96], strides = [1, 1]} : vector<24x96xf32> to vector<4x96xf32>
    %118 = vector.extract_strided_slice %116 {offsets = [0, 0], sizes = [4, 96], strides = [1, 1]} : vector<8x224xf32> to vector<4x96xf32>
    %119 = vector.extract_strided_slice %114 {offsets = [0, 0], sizes = [4, 32], strides = [1, 1]} : vector<8x32xf32> to vector<4x32xf32>
    %120 = arith.addf %117, %118 : vector<4x96xf32>
    %121 = vector.extract_strided_slice %120 {offsets = [0, 0], sizes = [4, 64], strides = [1, 1]} : vector<4x96xf32> to vector<4x64xf32>
    %122 = arith.negf %121 : vector<4x64xf32>
    %123 = math.exp %122 : vector<4x64xf32>
    %cst_30 = arith.constant 1.000000e+00 : f32
    %124 = vector.broadcast %cst_30 : f32 to vector<4x64xf32>
    %125 = arith.addf %124, %123 : vector<4x64xf32>
    %126 = arith.divf %124, %125 : vector<4x64xf32>
    %127 = vector.extract_strided_slice %126 {offsets = [0, 0], sizes = [4, 32], strides = [1, 1]} : vector<4x64xf32> to vector<4x32xf32>
    %128 = vector.extract_strided_slice %126 {offsets = [0, 32], sizes = [4, 32], strides = [1, 1]} : vector<4x64xf32> to vector<4x32xf32>
    %129 = vector.extract_strided_slice %117 {offsets = [0, 64], sizes = [4, 32], strides = [1, 1]} : vector<4x96xf32> to vector<4x32xf32>
    %130 = vector.extract_strided_slice %118 {offsets = [0, 64], sizes = [4, 32], strides = [1, 1]} : vector<4x96xf32> to vector<4x32xf32>
    %131 = arith.mulf %127, %130 : vector<4x32xf32>
    %132 = arith.addf %129, %131 : vector<4x32xf32>
    %133 = math.tanh %132 : vector<4x32xf32>
    %134 = arith.subf %119, %133 : vector<4x32xf32>
    %135 = arith.mulf %128, %134 : vector<4x32xf32>
    %136 = arith.addf %133, %135 : vector<4x32xf32>
    %cst_31 = arith.constant dense<0.000000e+00> : vector<4x96xf32>
    %137 = tpu.matmul %136, %17, %cst_31 {dimension_numbers = #tpu.dot_dimension_numbers<[1], [0], [0], [1], [0, 0, 1, 1], [], []>} : vector<4x32xf32>, vector<32x96xf32>, vector<4x96xf32> -> vector<4x96xf32>
    %138 = arith.addf %137, %20 : vector<4x96xf32>
    %139 = vector.extract_strided_slice %116 {offsets = [4, 128], sizes = [4, 96], strides = [1, 1]} : vector<8x224xf32> to vector<4x96xf32>
    %140 = vector.extract_strided_slice %114 {offsets = [4, 0], sizes = [4, 32], strides = [1, 1]} : vector<8x32xf32> to vector<4x32xf32>
    %141 = arith.addf %138, %139 : vector<4x96xf32>
    %142 = vector.extract_strided_slice %141 {offsets = [0, 0], sizes = [4, 64], strides = [1, 1]} : vector<4x96xf32> to vector<4x64xf32>
    %143 = arith.negf %142 : vector<4x64xf32>
    %144 = math.exp %143 : vector<4x64xf32>
    %cst_32 = arith.constant 1.000000e+00 : f32
    %145 = vector.broadcast %cst_32 : f32 to vector<4x64xf32>
    %146 = arith.addf %145, %144 : vector<4x64xf32>
    %147 = arith.divf %145, %146 : vector<4x64xf32>
    %148 = vector.extract_strided_slice %147 {offsets = [0, 0], sizes = [4, 32], strides = [1, 1]} : vector<4x64xf32> to vector<4x32xf32>
    %149 = vector.extract_strided_slice %147 {offsets = [0, 32], sizes = [4, 32], strides = [1, 1]} : vector<4x64xf32> to vector<4x32xf32>
    %150 = vector.extract_strided_slice %138 {offsets = [0, 64], sizes = [4, 32], strides = [1, 1]} : vector<4x96xf32> to vector<4x32xf32>
    %151 = vector.extract_strided_slice %139 {offsets = [0, 64], sizes = [4, 32], strides = [1, 1]} : vector<4x96xf32> to vector<4x32xf32>
    %152 = arith.mulf %148, %151 : vector<4x32xf32>
    %153 = arith.addf %150, %152 : vector<4x32xf32>
    %154 = math.tanh %153 : vector<4x32xf32>
    %155 = arith.subf %140, %154 : vector<4x32xf32>
    %156 = arith.mulf %149, %155 : vector<4x32xf32>
    %157 = arith.addf %154, %156 : vector<4x32xf32>
    %c8 = arith.constant 8 : index
    %c0_33 = arith.constant 0 : index
    %158 = vector.load %arg7[%c8, %c0_33] : memref<24x32xf32, #tpu.memory_space<vmem>>, vector<4x32xf32>
    tpu.vector_store %arg7[%c8, %c0_33], %157 {strides = array<i32>} : memref<24x32xf32, #tpu.memory_space<vmem>>, vector<4x32xf32>,
    %159 = tpu.concatenate %136, %157 in 0 : vector<4x32xf32>, vector<4x32xf32> -> vector<8x32xf32>
    %cst_34 = arith.constant dense<0.000000e+00> : vector<8x224xf32>
    %160 = tpu.matmul %159, %16, %cst_34 {dimension_numbers = #tpu.dot_dimension_numbers<[1], [0], [0], [1], [0, 0, 1, 1], [], []>} : vector<8x32xf32>, vector<32x224xf32>, vector<8x224xf32> -> vector<8x224xf32>
    %161 = arith.addf %160, %23 : vector<8x224xf32>
    %162 = vector.extract_strided_slice %7 {offsets = [12, 0], sizes = [4, 96], strides = [1, 1]} : vector<24x96xf32> to vector<4x96xf32>
    %163 = vector.extract_strided_slice %161 {offsets = [0, 0], sizes = [4, 96], strides = [1, 1]} : vector<8x224xf32> to vector<4x96xf32>
    %164 = vector.extract_strided_slice %159 {offsets = [0, 0], sizes = [4, 32], strides = [1, 1]} : vector<8x32xf32> to vector<4x32xf32>
    %165 = arith.addf %162, %163 : vector<4x96xf32>
    %166 = vector.extract_strided_slice %165 {offsets = [0, 0], sizes = [4, 64], strides = [1, 1]} : vector<4x96xf32> to vector<4x64xf32>
    %167 = arith.negf %166 : vector<4x64xf32>
    %168 = math.exp %167 : vector<4x64xf32>
    %cst_35 = arith.constant 1.000000e+00 : f32
    %169 = vector.broadcast %cst_35 : f32 to vector<4x64xf32>
    %170 = arith.addf %169, %168 : vector<4x64xf32>
    %171 = arith.divf %169, %170 : vector<4x64xf32>
    %172 = vector.extract_strided_slice %171 {offsets = [0, 0], sizes = [4, 32], strides = [1, 1]} : vector<4x64xf32> to vector<4x32xf32>
    %173 = vector.extract_strided_slice %171 {offsets = [0, 32], sizes = [4, 32], strides = [1, 1]} : vector<4x64xf32> to vector<4x32xf32>
    %174 = vector.extract_strided_slice %162 {offsets = [0, 64], sizes = [4, 32], strides = [1, 1]} : vector<4x96xf32> to vector<4x32xf32>
    %175 = vector.extract_strided_slice %163 {offsets = [0, 64], sizes = [4, 32], strides = [1, 1]} : vector<4x96xf32> to vector<4x32xf32>
    %176 = arith.mulf %172, %175 : vector<4x32xf32>
    %177 = arith.addf %174, %176 : vector<4x32xf32>
    %178 = math.tanh %177 : vector<4x32xf32>
    %179 = arith.subf %164, %178 : vector<4x32xf32>
    %180 = arith.mulf %173, %179 : vector<4x32xf32>
    %181 = arith.addf %178, %180 : vector<4x32xf32>
    %cst_36 = arith.constant dense<0.000000e+00> : vector<4x96xf32>
    %182 = tpu.matmul %181, %17, %cst_36 {dimension_numbers = #tpu.dot_dimension_numbers<[1], [0], [0], [1], [0, 0, 1, 1], [], []>} : vector<4x32xf32>, vector<32x96xf32>, vector<4x96xf32> -> vector<4x96xf32>
    %183 = arith.addf %182, %20 : vector<4x96xf32>
    %184 = vector.extract_strided_slice %161 {offsets = [4, 128], sizes = [4, 96], strides = [1, 1]} : vector<8x224xf32> to vector<4x96xf32>
    %185 = vector.extract_strided_slice %159 {offsets = [4, 0], sizes = [4, 32], strides = [1, 1]} : vector<8x32xf32> to vector<4x32xf32>
    %186 = arith.addf %183, %184 : vector<4x96xf32>
    %187 = vector.extract_strided_slice %186 {offsets = [0, 0], sizes = [4, 64], strides = [1, 1]} : vector<4x96xf32> to vector<4x64xf32>
    %188 = arith.negf %187 : vector<4x64xf32>
    %189 = math.exp %188 : vector<4x64xf32>
    %cst_37 = arith.constant 1.000000e+00 : f32
    %190 = vector.broadcast %cst_37 : f32 to vector<4x64xf32>
    %191 = arith.addf %190, %189 : vector<4x64xf32>
    %192 = arith.divf %190, %191 : vector<4x64xf32>
    %193 = vector.extract_strided_slice %192 {offsets = [0, 0], sizes = [4, 32], strides = [1, 1]} : vector<4x64xf32> to vector<4x32xf32>
    %194 = vector.extract_strided_slice %192 {offsets = [0, 32], sizes = [4, 32], strides = [1, 1]} : vector<4x64xf32> to vector<4x32xf32>
    %195 = vector.extract_strided_slice %183 {offsets = [0, 64], sizes = [4, 32], strides = [1, 1]} : vector<4x96xf32> to vector<4x32xf32>
    %196 = vector.extract_strided_slice %184 {offsets = [0, 64], sizes = [4, 32], strides = [1, 1]} : vector<4x96xf32> to vector<4x32xf32>
    %197 = arith.mulf %193, %196 : vector<4x32xf32>
    %198 = arith.addf %195, %197 : vector<4x32xf32>
    %199 = math.tanh %198 : vector<4x32xf32>
    %200 = arith.subf %185, %199 : vector<4x32xf32>
    %201 = arith.mulf %194, %200 : vector<4x32xf32>
    %202 = arith.addf %199, %201 : vector<4x32xf32>
    %c12 = arith.constant 12 : index
    %c0_38 = arith.constant 0 : index
    %203 = vector.load %arg7[%c12, %c0_38] : memref<24x32xf32, #tpu.memory_space<vmem>>, vector<4x32xf32>
    tpu.vector_store %arg7[%c12, %c0_38], %202 {strides = array<i32>} : memref<24x32xf32, #tpu.memory_space<vmem>>, vector<4x32xf32>,
    %204 = tpu.concatenate %181, %202 in 0 : vector<4x32xf32>, vector<4x32xf32> -> vector<8x32xf32>
    %cst_39 = arith.constant dense<0.000000e+00> : vector<8x224xf32>
    %205 = tpu.matmul %204, %16, %cst_39 {dimension_numbers = #tpu.dot_dimension_numbers<[1], [0], [0], [1], [0, 0, 1, 1], [], []>} : vector<8x32xf32>, vector<32x224xf32>, vector<8x224xf32> -> vector<8x224xf32>
    %206 = arith.addf %205, %23 : vector<8x224xf32>
    %207 = vector.extract_strided_slice %7 {offsets = [16, 0], sizes = [4, 96], strides = [1, 1]} : vector<24x96xf32> to vector<4x96xf32>
    %208 = vector.extract_strided_slice %206 {offsets = [0, 0], sizes = [4, 96], strides = [1, 1]} : vector<8x224xf32> to vector<4x96xf32>
    %209 = vector.extract_strided_slice %204 {offsets = [0, 0], sizes = [4, 32], strides = [1, 1]} : vector<8x32xf32> to vector<4x32xf32>
    %210 = arith.addf %207, %208 : vector<4x96xf32>
    %211 = vector.extract_strided_slice %210 {offsets = [0, 0], sizes = [4, 64], strides = [1, 1]} : vector<4x96xf32> to vector<4x64xf32>
    %212 = arith.negf %211 : vector<4x64xf32>
    %213 = math.exp %212 : vector<4x64xf32>
    %cst_40 = arith.constant 1.000000e+00 : f32
    %214 = vector.broadcast %cst_40 : f32 to vector<4x64xf32>
    %215 = arith.addf %214, %213 : vector<4x64xf32>
    %216 = arith.divf %214, %215 : vector<4x64xf32>
    %217 = vector.extract_strided_slice %216 {offsets = [0, 0], sizes = [4, 32], strides = [1, 1]} : vector<4x64xf32> to vector<4x32xf32>
    %218 = vector.extract_strided_slice %216 {offsets = [0, 32], sizes = [4, 32], strides = [1, 1]} : vector<4x64xf32> to vector<4x32xf32>
    %219 = vector.extract_strided_slice %207 {offsets = [0, 64], sizes = [4, 32], strides = [1, 1]} : vector<4x96xf32> to vector<4x32xf32>
    %220 = vector.extract_strided_slice %208 {offsets = [0, 64], sizes = [4, 32], strides = [1, 1]} : vector<4x96xf32> to vector<4x32xf32>
    %221 = arith.mulf %217, %220 : vector<4x32xf32>
    %222 = arith.addf %219, %221 : vector<4x32xf32>
    %223 = math.tanh %222 : vector<4x32xf32>
    %224 = arith.subf %209, %223 : vector<4x32xf32>
    %225 = arith.mulf %218, %224 : vector<4x32xf32>
    %226 = arith.addf %223, %225 : vector<4x32xf32>
    %cst_41 = arith.constant dense<0.000000e+00> : vector<4x96xf32>
    %227 = tpu.matmul %226, %17, %cst_41 {dimension_numbers = #tpu.dot_dimension_numbers<[1], [0], [0], [1], [0, 0, 1, 1], [], []>} : vector<4x32xf32>, vector<32x96xf32>, vector<4x96xf32> -> vector<4x96xf32>
    %228 = arith.addf %227, %20 : vector<4x96xf32>
    %229 = vector.extract_strided_slice %206 {offsets = [4, 128], sizes = [4, 96], strides = [1, 1]} : vector<8x224xf32> to vector<4x96xf32>
    %230 = vector.extract_strided_slice %204 {offsets = [4, 0], sizes = [4, 32], strides = [1, 1]} : vector<8x32xf32> to vector<4x32xf32>
    %231 = arith.addf %228, %229 : vector<4x96xf32>
    %232 = vector.extract_strided_slice %231 {offsets = [0, 0], sizes = [4, 64], strides = [1, 1]} : vector<4x96xf32> to vector<4x64xf32>
    %233 = arith.negf %232 : vector<4x64xf32>
    %234 = math.exp %233 : vector<4x64xf32>
    %cst_42 = arith.constant 1.000000e+00 : f32
    %235 = vector.broadcast %cst_42 : f32 to vector<4x64xf32>
    %236 = arith.addf %235, %234 : vector<4x64xf32>
    %237 = arith.divf %235, %236 : vector<4x64xf32>
    %238 = vector.extract_strided_slice %237 {offsets = [0, 0], sizes = [4, 32], strides = [1, 1]} : vector<4x64xf32> to vector<4x32xf32>
    %239 = vector.extract_strided_slice %237 {offsets = [0, 32], sizes = [4, 32], strides = [1, 1]} : vector<4x64xf32> to vector<4x32xf32>
    %240 = vector.extract_strided_slice %228 {offsets = [0, 64], sizes = [4, 32], strides = [1, 1]} : vector<4x96xf32> to vector<4x32xf32>
    %241 = vector.extract_strided_slice %229 {offsets = [0, 64], sizes = [4, 32], strides = [1, 1]} : vector<4x96xf32> to vector<4x32xf32>
    %242 = arith.mulf %238, %241 : vector<4x32xf32>
    %243 = arith.addf %240, %242 : vector<4x32xf32>
    %244 = math.tanh %243 : vector<4x32xf32>
    %245 = arith.subf %230, %244 : vector<4x32xf32>
    %246 = arith.mulf %239, %245 : vector<4x32xf32>
    %247 = arith.addf %244, %246 : vector<4x32xf32>
    %c16 = arith.constant 16 : index
    %c0_43 = arith.constant 0 : index
    %248 = vector.load %arg7[%c16, %c0_43] : memref<24x32xf32, #tpu.memory_space<vmem>>, vector<4x32xf32>
    tpu.vector_store %arg7[%c16, %c0_43], %247 {strides = array<i32>} : memref<24x32xf32, #tpu.memory_space<vmem>>, vector<4x32xf32>,
    %249 = tpu.concatenate %226, %247 in 0 : vector<4x32xf32>, vector<4x32xf32> -> vector<8x32xf32>
    %cst_44 = arith.constant dense<0.000000e+00> : vector<8x224xf32>
    %250 = tpu.matmul %249, %16, %cst_44 {dimension_numbers = #tpu.dot_dimension_numbers<[1], [0], [0], [1], [0, 0, 1, 1], [], []>} : vector<8x32xf32>, vector<32x224xf32>, vector<8x224xf32> -> vector<8x224xf32>
    %251 = arith.addf %250, %23 : vector<8x224xf32>
    %252 = vector.extract_strided_slice %7 {offsets = [20, 0], sizes = [4, 96], strides = [1, 1]} : vector<24x96xf32> to vector<4x96xf32>
    %253 = vector.extract_strided_slice %251 {offsets = [0, 0], sizes = [4, 96], strides = [1, 1]} : vector<8x224xf32> to vector<4x96xf32>
    %254 = vector.extract_strided_slice %249 {offsets = [0, 0], sizes = [4, 32], strides = [1, 1]} : vector<8x32xf32> to vector<4x32xf32>
    %255 = arith.addf %252, %253 : vector<4x96xf32>
    %256 = vector.extract_strided_slice %255 {offsets = [0, 0], sizes = [4, 64], strides = [1, 1]} : vector<4x96xf32> to vector<4x64xf32>
    %257 = arith.negf %256 : vector<4x64xf32>
    %258 = math.exp %257 : vector<4x64xf32>
    %cst_45 = arith.constant 1.000000e+00 : f32
    %259 = vector.broadcast %cst_45 : f32 to vector<4x64xf32>
    %260 = arith.addf %259, %258 : vector<4x64xf32>
    %261 = arith.divf %259, %260 : vector<4x64xf32>
    %262 = vector.extract_strided_slice %261 {offsets = [0, 0], sizes = [4, 32], strides = [1, 1]} : vector<4x64xf32> to vector<4x32xf32>
    %263 = vector.extract_strided_slice %261 {offsets = [0, 32], sizes = [4, 32], strides = [1, 1]} : vector<4x64xf32> to vector<4x32xf32>
    %264 = vector.extract_strided_slice %252 {offsets = [0, 64], sizes = [4, 32], strides = [1, 1]} : vector<4x96xf32> to vector<4x32xf32>
    %265 = vector.extract_strided_slice %253 {offsets = [0, 64], sizes = [4, 32], strides = [1, 1]} : vector<4x96xf32> to vector<4x32xf32>
    %266 = arith.mulf %262, %265 : vector<4x32xf32>
    %267 = arith.addf %264, %266 : vector<4x32xf32>
    %268 = math.tanh %267 : vector<4x32xf32>
    %269 = arith.subf %254, %268 : vector<4x32xf32>
    %270 = arith.mulf %263, %269 : vector<4x32xf32>
    %271 = arith.addf %268, %270 : vector<4x32xf32>
    %cst_46 = arith.constant dense<0.000000e+00> : vector<4x96xf32>
    %272 = tpu.matmul %271, %17, %cst_46 {dimension_numbers = #tpu.dot_dimension_numbers<[1], [0], [0], [1], [0, 0, 1, 1], [], []>} : vector<4x32xf32>, vector<32x96xf32>, vector<4x96xf32> -> vector<4x96xf32>
    %273 = arith.addf %272, %20 : vector<4x96xf32>
    %274 = vector.extract_strided_slice %251 {offsets = [4, 128], sizes = [4, 96], strides = [1, 1]} : vector<8x224xf32> to vector<4x96xf32>
    %275 = vector.extract_strided_slice %249 {offsets = [4, 0], sizes = [4, 32], strides = [1, 1]} : vector<8x32xf32> to vector<4x32xf32>
    %276 = arith.addf %273, %274 : vector<4x96xf32>
    %277 = vector.extract_strided_slice %276 {offsets = [0, 0], sizes = [4, 64], strides = [1, 1]} : vector<4x96xf32> to vector<4x64xf32>
    %278 = arith.negf %277 : vector<4x64xf32>
    %279 = math.exp %278 : vector<4x64xf32>
    %cst_47 = arith.constant 1.000000e+00 : f32
    %280 = vector.broadcast %cst_47 : f32 to vector<4x64xf32>
    %281 = arith.addf %280, %279 : vector<4x64xf32>
    %282 = arith.divf %280, %281 : vector<4x64xf32>
    %283 = vector.extract_strided_slice %282 {offsets = [0, 0], sizes = [4, 32], strides = [1, 1]} : vector<4x64xf32> to vector<4x32xf32>
    %284 = vector.extract_strided_slice %282 {offsets = [0, 32], sizes = [4, 32], strides = [1, 1]} : vector<4x64xf32> to vector<4x32xf32>
    %285 = vector.extract_strided_slice %273 {offsets = [0, 64], sizes = [4, 32], strides = [1, 1]} : vector<4x96xf32> to vector<4x32xf32>
    %286 = vector.extract_strided_slice %274 {offsets = [0, 64], sizes = [4, 32], strides = [1, 1]} : vector<4x96xf32> to vector<4x32xf32>
    %287 = arith.mulf %283, %286 : vector<4x32xf32>
    %288 = arith.addf %285, %287 : vector<4x32xf32>
    %289 = math.tanh %288 : vector<4x32xf32>
    %290 = arith.subf %275, %289 : vector<4x32xf32>
    %291 = arith.mulf %284, %290 : vector<4x32xf32>
    %292 = arith.addf %289, %291 : vector<4x32xf32>
    %c20 = arith.constant 20 : index
    %c0_48 = arith.constant 0 : index
    %293 = vector.load %arg7[%c20, %c0_48] : memref<24x32xf32, #tpu.memory_space<vmem>>, vector<4x32xf32>
    tpu.vector_store %arg7[%c20, %c0_48], %292 {strides = array<i32>} : memref<24x32xf32, #tpu.memory_space<vmem>>, vector<4x32xf32>,
    %c0_49 = arith.constant 0 : index
    %c0_50 = arith.constant 0 : index
    %294 = vector.load %arg7[%c0_49, %c0_50] : memref<24x32xf32, #tpu.memory_space<vmem>>, vector<24x32xf32>
    %c0_51 = arith.constant 0 : index
    %c384 = arith.constant 384 : index
    %295 = vector.load %arg3[%c0_51, %c384] : memref<32x896xf32, #tpu.memory_space<vmem>>, vector<32x64xf32>
    %cst_52 = arith.constant dense<0.000000e+00> : vector<24x64xf32>
    %296 = tpu.matmul %294, %295, %cst_52 {dimension_numbers = #tpu.dot_dimension_numbers<[1], [0], [0], [1], [0, 0, 1, 1], [], []>} : vector<24x32xf32>, vector<32x64xf32>, vector<24x64xf32> -> vector<24x64xf32>
    %297 = vector.extract_strided_slice %296 {offsets = [0, 0], sizes = [24, 32], strides = [1, 1]} : vector<24x64xf32> to vector<24x32xf32>
    %298 = vector.extract_strided_slice %296 {offsets = [0, 32], sizes = [24, 32], strides = [1, 1]} : vector<24x64xf32> to vector<24x32xf32>
    %299 = vector.shape_cast %297 : vector<24x32xf32> to vector<24x1x32xf32>
    %300 = tpu.concatenate %15, %15, %15, %15, %15, %15 in 0 : vector<4x8x32xf32>, vector<4x8x32xf32>, vector<4x8x32xf32>, vector<4x8x32xf32>, vector<4x8x32xf32>, vector<4x8x32xf32> -> vector<24x8x32xf32>
    %301 = vector.broadcast %299 : vector<24x1x32xf32> to vector<24x8x32xf32>
    %302 = arith.addf %301, %300 : vector<24x8x32xf32>
    %303 = arith.negf %302 : vector<24x8x32xf32>
    %304 = math.exp %303 : vector<24x8x32xf32>
    %cst_53 = arith.constant 1.000000e+00 : f32
    %305 = vector.broadcast %cst_53 : f32 to vector<24x8x32xf32>
    %306 = arith.addf %305, %304 : vector<24x8x32xf32>
    %307 = arith.divf %305, %306 : vector<24x8x32xf32>
    %308 = tpu.concatenate %1, %1, %1, %1, %1, %1 in 0 : vector<4x8x32xf32>, vector<4x8x32xf32>, vector<4x8x32xf32>, vector<4x8x32xf32>, vector<4x8x32xf32>, vector<4x8x32xf32> -> vector<24x8x32xf32>
    %309 = arith.mulf %307, %308 : vector<24x8x32xf32>
    %cst_54 = arith.constant dense<0.000000e+00> : vector<24x32xf32>
    %310 = vector.multi_reduction <add>, %309, %cst_54 [1] : vector<24x8x32xf32> to vector<24x32xf32>
    %311 = arith.addf %298, %8 : vector<24x32xf32>
    %c4_55 = arith.constant 4 : index
    %c0_56 = arith.constant 0 : index
    %312 = vector.load %arg5[%c4_55, %c0_56] : memref<8x256xf32, #tpu.memory_space<vmem>>, vector<1x32xf32>
    %313 = vector.broadcast %312 : vector<1x32xf32> to vector<24x32xf32>
    %314 = arith.addf %311, %313 : vector<24x32xf32>
    %c0_57 = arith.constant 0 : index
    %c640 = arith.constant 640 : index
    %315 = vector.load %arg3[%c0_57, %c640] : memref<32x896xf32, #tpu.memory_space<vmem>>, vector<32x32xf32>
    %cst_58 = arith.constant dense<0.000000e+00> : vector<24x32xf32>
    %316 = tpu.matmul %310, %315, %cst_58 {dimension_numbers = #tpu.dot_dimension_numbers<[1], [0], [0], [1], [0, 0, 1, 1], [], []>} : vector<24x32xf32>, vector<32x32xf32>, vector<24x32xf32> -> vector<24x32xf32>
    %317 = arith.addf %314, %316 : vector<24x32xf32>
    %318 = math.tanh %317 : vector<24x32xf32>
    %c0_59 = arith.constant 0 : index
    %c768 = arith.constant 768 : index
    %319 = vector.load %arg3[%c0_59, %c768] : memref<32x896xf32, #tpu.memory_space<vmem>>, vector<32x128xf32>
    %cst_60 = arith.constant dense<0.000000e+00> : vector<24x128xf32>
    %320 = tpu.matmul %318, %319, %cst_60 {dimension_numbers = #tpu.dot_dimension_numbers<[1], [0], [0], [1], [0, 0, 1, 1], [], []>} : vector<24x32xf32>, vector<32x128xf32>, vector<24x128xf32> -> vector<24x128xf32>
    %c5 = arith.constant 5 : index
    %c0_61 = arith.constant 0 : index
    %321 = vector.load %arg5[%c5, %c0_61] : memref<8x256xf32, #tpu.memory_space<vmem>>, vector<1x128xf32>
    %322 = vector.broadcast %321 : vector<1x128xf32> to vector<24x128xf32>
    %323 = arith.addf %320, %322 : vector<24x128xf32>
    %c0_62 = arith.constant 0 : index
    %c0_63 = arith.constant 0 : index
    %324 = vector.load %arg6[%c0_62, %c0_63] : memref<24x128xf32, #tpu.memory_space<vmem>>, vector<24x128xf32>
    tpu.vector_store %arg6[%c0_62, %c0_63], %323 {strides = array<i32>} : memref<24x128xf32, #tpu.memory_space<vmem>>, vector<24x128xf32>,
    return
  }
}

</mosaic_0001>

<llo_original>
// kernel: att_gate_decoder_forward.1
$region0: #{att_gate_decoder_forward.1}
  #allocation0 [shape = 'u32[]', space=smem, size = 0x4, offset = 0x4, fixed_abs, tag = 'smem constant byte address 0x4 - core index']
  #allocation1 [shape = 'u32[144,128]{1,0:T(1,128)}', space=vmem, size = 0x12000, scoped, tag = 'internal scratch']
  #allocation2 [shape = 'f32[24,32]{1,0:T(8,128)}', space=vmem, size = 0x3000, scoped, tag = 'scratch operand']
  %s0 = inlined_call_operand.vmem [shape: f32[24,16], index: 0, kind: input, shape index: {}]
  %s1 = inlined_call_operand.vmem [shape: f32[8,32], index: 1, kind: input, shape index: {}]
  %s2 = inlined_call_operand.vmem [shape: f32[4,8,32], index: 2, kind: input, shape index: {}]
  %s3 = inlined_call_operand.vmem [shape: f32[32,896], index: 3, kind: input, shape index: {}]
  %s4 = inlined_call_operand.vmem [shape: f32[16,128], index: 4, kind: input, shape index: {}]
  %s5 = inlined_call_operand.vmem [shape: f32[8,256], index: 5, kind: input, shape index: {}]
  %s6 = inlined_call_operand.hbm [shape: f32[24,128], index: 6, kind: output, shape index: {}]
  %s7 = sld [smem:[#allocation0]]
  $region34: #{att_gate_decoder_forward.1} parent=0
    _
  %s9 = ssub.s32 1, %s7
  %s10 = scalar_select 0, %s9, %s7
  $region1: #{att_gate_decoder_forward.1} parent=0
    #allocation3 [shape = 'u8[12288]{0}', space=vmem, size = 0x3000, scoped, tag = 'output window, operand 0, single buffered']
    #allocation4 [shape = 's32[1]{0}', space=sflag, size = 0x4, scoped, tag = 'scoped memory for att_gate_decoder_forward.1']
    %11 = vsyncpa [#allocation4], 0
    // Predicated region
    $region2: #{att_gate_decoder_forward.1} parent=1 // pred_check
      _
    $region3: #{att_gate_decoder_forward.1} parent=1 // pred_check_branch
      %13 = sbr.rel (0) target = $region5
    $region4: #{att_gate_decoder_forward.1} parent=1 // pred_region
      _
    $region5: #{att_gate_decoder_forward.1} parent=1 // pred_fallthru
      _
    // Predicated region
    $region6: #{att_gate_decoder_forward.1} parent=1 // pred_check
      _
    $region7: #{att_gate_decoder_forward.1} parent=1 // pred_check_branch
      %15 = sbr.rel (0) target = $region9
    $region8: #{att_gate_decoder_forward.1} parent=1 // pred_region
      _
    $region9: #{att_gate_decoder_forward.1} parent=1 // pred_fallthru
      _
    // Predicated region
    $region10: #{att_gate_decoder_forward.1} parent=1 // pred_check
      _
    $region11: #{att_gate_decoder_forward.1} parent=1 // pred_check_branch
      %17 = sbr.rel (0) target = $region13
    $region12: #{att_gate_decoder_forward.1} parent=1 // pred_region
      _
    $region13: #{att_gate_decoder_forward.1} parent=1 // pred_fallthru
      _
    // Predicated region
    $region14: #{att_gate_decoder_forward.1} parent=1 // pred_check
      _
    $region15: #{att_gate_decoder_forward.1} parent=1 // pred_check_branch
      %19 = sbr.rel (0) target = $region17
    $region16: #{att_gate_decoder_forward.1} parent=1 // pred_region
      _
    $region17: #{att_gate_decoder_forward.1} parent=1 // pred_fallthru
      _
    // Predicated region
    $region18: #{att_gate_decoder_forward.1} parent=1 // pred_check
      _
    $region19: #{att_gate_decoder_forward.1} parent=1 // pred_check_branch
      %21 = sbr.rel (0) target = $region21
    $region20: #{att_gate_decoder_forward.1} parent=1 // pred_region
      _
    $region21: #{att_gate_decoder_forward.1} parent=1 // pred_fallthru
      _
    // Predicated region
    $region22: #{att_gate_decoder_forward.1} parent=1 // pred_check
      _
    $region23: #{att_gate_decoder_forward.1} parent=1 // pred_check_branch
      %23 = sbr.rel (0) target = $region25
    $region24: #{att_gate_decoder_forward.1} parent=1 // pred_region
      _
    $region25: #{att_gate_decoder_forward.1} parent=1 // pred_fallthru
      _
    %v24 = vld [vmem:[%s0] sm:$0xff]
    %v25 = vld [vmem:[%s0 + $0x8] sm:$0xff]
    %v26 = vld [vmem:[%s0 + $0x10] sm:$0xff]
    %v27 = vld [vmem:[%s2] sm:$0xff]
    %v28 = vld [vmem:[%s2 + $0x8] sm:$0xff]
    %v29 = vld [vmem:[%s2 + $0x10] sm:$0xff]
    %v30 = vld [vmem:[%s2 + $0x18] sm:$0xff]
    %v31 = vld [vmem:[%s4] sm:$0xff]
    %v32 = vld [vmem:[%s4 + $0x8] sm:$0xff]
    %vm33 = vcmask 130048
    %v35 = vsel %vm33, %v24, 0
    %v38 = vsel %vm33, %v25, 0
    %v41 = vsel %vm33, %v26, 0
    %43 = vmatprep.subr.mxu0 0.0
    %44 = vmatpush1.msra.mxu0 0.0
    %45 = vmatprep.subr.mxu0 0.0
    %46 = vmatpush1.msra.mxu0 0.0
    %47 = vmatprep.subr.mxu0 0.0
    %48 = vmatpush1.msra.mxu0 0.0
    %49 = vmatprep.subr.mxu0 0.0
    %50 = vmatpush1.msra.mxu0 0.0
    %51 = vmatprep.subr.mxu0 0.0
    %52 = vmatpush1.msra.mxu0 0.0
    %53 = vmatprep.subr.mxu0 0.0
    %54 = vmatpush1.msra.mxu0 0.0
    %55 = vmatprep.subr.mxu0 0.0
    %56 = vmatpush1.msra.mxu0 0.0
    %57 = vmatprep.subr.mxu0 0.0
    %58 = vmatpush1.msra.mxu0 0.0
    %59 = vmatprep.subr.mxu0 0.0
    %60 = vmatpush1.msra.mxu0 0.0
    %61 = vmatprep.subr.mxu0 0.0
    %62 = vmatpush1.msra.mxu0 0.0
    %63 = vmatprep.subr.mxu0 0.0
    %64 = vmatpush1.msra.mxu0 0.0
    %65 = vmatprep.subr.mxu0 0.0
    %66 = vmatpush1.msra.mxu0 0.0
    %67 = vmatprep.subr.mxu0 0.0
    %68 = vmatpush1.msra.mxu0 0.0
    %69 = vmatprep.subr.mxu0 0.0
    %70 = vmatpush1.msra.mxu0 0.0
    %71 = vmatprep.subr.mxu0 0.0
    %72 = vmatpush1.msra.mxu0 %v32
    %73 = vmatprep.subr.mxu0 0.0
    %74 = vmatpush1.msra.mxu0 %v31
    %75 = vmatprep.subr.mxu0 0.0
    %76 = vmatpush2.msra.mxu0 0.0
    %77 = vmatprep.subr.mxu0 0.0
    %78 = vmatpush2.msra.mxu0 0.0
    %79 = vmatprep.subr.mxu0 0.0
    %80 = vmatpush2.msra.mxu0 0.0
    %81 = vmatprep.subr.mxu0 0.0
    %82 = vmatpush2.msra.mxu0 0.0
    %83 = vmatprep.subr.mxu0 0.0
    %84 = vmatpush2.msra.mxu0 0.0
    %85 = vmatprep.subr.mxu0 0.0
    %86 = vmatpush2.msra.mxu0 0.0
    %87 = vmatprep.subr.mxu0 0.0
    %88 = vmatpush2.msra.mxu0 0.0
    %89 = vmatprep.subr.mxu0 0.0
    %90 = vmatpush2.msra.mxu0 0.0
    %91 = vmatprep.subr.mxu0 0.0
    %92 = vmatpush2.msra.mxu0 0.0
    %93 = vmatprep.subr.mxu0 0.0
    %94 = vmatpush2.msra.mxu0 0.0
    %95 = vmatprep.subr.mxu0 0.0
    %96 = vmatpush2.msra.mxu0 0.0
    %97 = vmatprep.subr.mxu0 0.0
    %98 = vmatpush2.msra.mxu0 0.0
    %99 = vmatprep.subr.mxu0 0.0
    %100 = vmatpush2.msra.mxu0 0.0
    %101 = vmatprep.subr.mxu0 0.0
    %102 = vmatpush2.msra.mxu0 0.0
    %103 = vmatprep.subr.mxu0 0.0
    %104 = vmatpush2.msra.mxu0 0.0
    %105 = vmatprep.subr.mxu0 0.0
    %106 = vmatpush2.msra.mxu0 0.0
    %107 = vmatprep.mubr.f32.mxu0 0.0
    %108 = vmatmul.mubr.f32.gmra.mxu0 %v35
    %v109 = vpop.f32.mrf.mxu0
    %v110 = vadd.f32 0.0, %v109
    %v111 = vpop.f32.mrf.mxu0
    %112 = vmatprep.mubr.f32.mxu0 0.0
    %113 = vmatmul.mubr.f32.gmra.mxu0 %v38
    %v114 = vpop.f32.mrf.mxu0
    %v115 = vadd.f32 0.0, %v114
    %v116 = vpop.f32.mrf.mxu0
    %117 = vmatprep.mubr.f32.mxu0 0.0
    %118 = vmatmul.mubr.f32.gmra.mxu0 %v41
    %v119 = vpop.f32.mrf.mxu0
    %v120 = vadd.f32 0.0, %v119
    %v121 = vpop.f32.mrf.mxu0
    %122 = vdwg.mxu0
    %v123 = vld [vmem:[%s5] ss:$0 sm:$0xff]
    %v124 = vadd.f32 %v110, %v123
    %v125 = vadd.f32 %v115, %v123
    %v126 = vadd.f32 %v120, %v123
    %v127 = vld [vmem:[%s3 + $0x20] sm:$0xff]
    %v128 = vld [vmem:[%s3 + $0x58] sm:$0xff]
    %v129 = vld [vmem:[%s3 + $0x90] sm:$0xff]
    %v130 = vld [vmem:[%s3 + $0xc8] sm:$0xff]
    %v131 = vld [vmem:[%s5 + $0x3] ss:$0 sm:$0xff]
    %vm132 = vcmask 261120
    %v134 = vsel %vm132, %v27, 0
    %v137 = vsel %vm132, %v28, 0
    %v140 = vsel %vm132, %v29, 0
    %v143 = vsel %vm132, %v30, 0
    %145 = vmatprep.subr.mxu0 0.0
    %146 = vmatpush1.msra.mxu0 0.0
    %147 = vmatprep.subr.mxu0 0.0
    %148 = vmatpush1.msra.mxu0 0.0
    %149 = vmatprep.subr.mxu0 0.0
    %150 = vmatpush1.msra.mxu0 0.0
    %151 = vmatprep.subr.mxu0 0.0
    %152 = vmatpush1.msra.mxu0 0.0
    %153 = vmatprep.subr.mxu0 0.0
    %154 = vmatpush1.msra.mxu0 0.0
    %155 = vmatprep.subr.mxu0 0.0
    %156 = vmatpush1.msra.mxu0 0.0
    %157 = vmatprep.subr.mxu0 0.0
    %158 = vmatpush1.msra.mxu0 0.0
    %159 = vmatprep.subr.mxu0 0.0
    %160 = vmatpush1.msra.mxu0 0.0
    %161 = vmatprep.subr.mxu0 0.0
    %162 = vmatpush1.msra.mxu0 0.0
    %163 = vmatprep.subr.mxu0 0.0
    %164 = vmatpush1.msra.mxu0 0.0
    %165 = vmatprep.subr.mxu0 0.0
    %166 = vmatpush1.msra.mxu0 0.0
    %167 = vmatprep.subr.mxu0 0.0
    %168 = vmatpush1.msra.mxu0 0.0
    %169 = vmatprep.subr.mxu0 0.0
    %170 = vmatpush1.msra.mxu0 %v130
    %171 = vmatprep.subr.mxu0 0.0
    %172 = vmatpush1.msra.mxu0 %v129
    %173 = vmatprep.subr.mxu0 0.0
    %174 = vmatpush1.msra.mxu0 %v128
    %175 = vmatprep.subr.mxu0 0.0
    %176 = vmatpush1.msra.mxu0 %v127
    %177 = vmatprep.subr.mxu0 0.0
    %178 = vmatpush2.msra.mxu0 0.0
    %179 = vmatprep.subr.mxu0 0.0
    %180 = vmatpush2.msra.mxu0 0.0
    %181 = vmatprep.subr.mxu0 0.0
    %182 = vmatpush2.msra.mxu0 0.0
    %183 = vmatprep.subr.mxu0 0.0
    %184 = vmatpush2.msra.mxu0 0.0
    %185 = vmatprep.subr.mxu0 0.0
    %186 = vmatpush2.msra.mxu0 0.0
    %187 = vmatprep.subr.mxu0 0.0
    %188 = vmatpush2.msra.mxu0 0.0
    %189 = vmatprep.subr.mxu0 0.0
    %190 = vmatpush2.msra.mxu0 0.0
    %191 = vmatprep.subr.mxu0 0.0
    %192 = vmatpush2.msra.mxu0 0.0
    %193 = vmatprep.subr.mxu0 0.0
    %194 = vmatpush2.msra.mxu0 0.0
    %195 = vmatprep.subr.mxu0 0.0
    %196 = vmatpush2.msra.mxu0 0.0
    %197 = vmatprep.subr.mxu0 0.0
    %198 = vmatpush2.msra.mxu0 0.0
    %199 = vmatprep.subr.mxu0 0.0
    %200 = vmatpush2.msra.mxu0 0.0
    %201 = vmatprep.subr.mxu0 0.0
    %202 = vmatpush2.msra.mxu0 0.0
    %203 = vmatprep.subr.mxu0 0.0
    %204 = vmatpush2.msra.mxu0 0.0
    %205 = vmatprep.subr.mxu0 0.0
    %206 = vmatpush2.msra.mxu0 0.0
    %207 = vmatprep.subr.mxu0 0.0
    %208 = vmatpush2.msra.mxu0 0.0
    %209 = vmatprep.mubr.f32.mxu0 0.0
    %210 = vmatmul.mubr.f32.gmra.mxu0 %v134
    %v211 = vpop.f32.mrf.mxu0
    %v212 = vadd.f32 %v131, %v211
    %v213 = vpop.f32.mrf.mxu0
    %214 = vmatprep.mubr.f32.mxu0 0.0
    %215 = vmatmul.mubr.f32.gmra.mxu0 %v137
    %v216 = vpop.f32.mrf.mxu0
    %v217 = vadd.f32 %v131, %v216
    %v218 = vpop.f32.mrf.mxu0
    %219 = vmatprep.mubr.f32.mxu0 0.0
    %220 = vmatmul.mubr.f32.gmra.mxu0 %v140
    %v221 = vpop.f32.mrf.mxu0
    %v222 = vadd.f32 %v131, %v221
    %v223 = vpop.f32.mrf.mxu0
    %224 = vmatprep.mubr.f32.mxu0 0.0
    %225 = vmatmul.mubr.f32.gmra.mxu0 %v143
    %v226 = vpop.f32.mrf.mxu0
    %v227 = vadd.f32 %v131, %v226
    %v228 = vpop.f32.mrf.mxu0
    %229 = vdwg.mxu0
    %v230 = vld [vmem:[%s3] sm:$0xff]
    %v231 = vld [vmem:[%s3 + $0x8] sm:$0xff]
    %v232 = vld [vmem:[%s3 + $0x38] sm:$0xff]
    %v233 = vld [vmem:[%s3 + $0x40] sm:$0xff]
    %v234 = vld [vmem:[%s3 + $0x70] sm:$0xff]
    %v235 = vld [vmem:[%s3 + $0x78] sm:$0xff]
    %v236 = vld [vmem:[%s3 + $0xa8] sm:$0xff]
    %v237 = vld [vmem:[%s3 + $0xb0] sm:$0xff]
    %v238 = vld [vmem:[%s3 + $0x10] sm:$0xff]
    %v239 = vld [vmem:[%s3 + $0x48] sm:$0xff]
    %v240 = vld [vmem:[%s3 + $0x80] sm:$0xff]
    %v241 = vld [vmem:[%s3 + $0xb8] sm:$0xff]
    %v242 = vld [vmem:[%s5 + $0x1] ss:$0 sm:$0xff]
    %s243 = scalar_lea.vmem %s5, 2
    %v244 = vld [vmem:[%s243] ss:$8 sm:$0x3]
    %v246 = vlaneseq
    %v247 = vshrl.u32 %v246, 7
    %v248 = vsub.s32 0, %v247
    %v249 = vrot.slane %v244, %v248
    %v250 = vlaneseq
    %v251 = vshrl.u32 %v250, 7
    %v252 = vsub.s32 1, %v251
    %v253 = vrot.slane %v244, %v252
    %v256 = vld [vmem:[%s1] sm:$0xff]
    %v258 = vsel %vm132, %v256, 0
    %260 = vmatprep.subr.mxu0 0.0
    %261 = vmatpush1.msra.mxu0 0.0
    %262 = vmatprep.subr.mxu0 0.0
    %263 = vmatpush1.msra.mxu0 0.0
    %264 = vmatprep.subr.mxu0 0.0
    %265 = vmatpush1.msra.mxu0 0.0
    %266 = vmatprep.subr.mxu0 0.0
    %267 = vmatpush1.msra.mxu0 0.0
    %268 = vmatprep.subr.mxu0 0.0
    %269 = vmatpush1.msra.mxu0 0.0
    %270 = vmatprep.subr.mxu0 0.0
    %271 = vmatpush1.msra.mxu0 0.0
    %272 = vmatprep.subr.mxu0 0.0
    %273 = vmatpush1.msra.mxu0 0.0
    %274 = vmatprep.subr.mxu0 0.0
    %275 = vmatpush1.msra.mxu0 0.0
    %276 = vmatprep.subr.mxu0 0.0
    %277 = vmatpush1.msra.mxu0 0.0
    %278 = vmatprep.subr.mxu0 0.0
    %279 = vmatpush1.msra.mxu0 0.0
    %280 = vmatprep.subr.mxu0 0.0
    %281 = vmatpush1.msra.mxu0 0.0
    %282 = vmatprep.subr.mxu0 0.0
    %283 = vmatpush1.msra.mxu0 0.0
    %284 = vmatprep.subr.mxu0 %v237
    %285 = vmatpush1.msra.mxu0 %v236
    %286 = vmatprep.subr.mxu0 %v235
    %287 = vmatpush1.msra.mxu0 %v234
    %288 = vmatprep.subr.mxu0 %v233
    %289 = vmatpush1.msra.mxu0 %v232
    %290 = vmatprep.subr.mxu0 %v231
    %291 = vmatpush1.msra.mxu0 %v230
    %292 = vmatprep.subr.mxu0 0.0
    %293 = vmatpush2.msra.mxu0 0.0
    %294 = vmatprep.subr.mxu0 0.0
    %295 = vmatpush2.msra.mxu0 0.0
    %296 = vmatprep.subr.mxu0 0.0
    %297 = vmatpush2.msra.mxu0 0.0
    %298 = vmatprep.subr.mxu0 0.0
    %299 = vmatpush2.msra.mxu0 0.0
    %300 = vmatprep.subr.mxu0 0.0
    %301 = vmatpush2.msra.mxu0 0.0
    %302 = vmatprep.subr.mxu0 0.0
    %303 = vmatpush2.msra.mxu0 0.0
    %304 = vmatprep.subr.mxu0 0.0
    %305 = vmatpush2.msra.mxu0 0.0
    %306 = vmatprep.subr.mxu0 0.0
    %307 = vmatpush2.msra.mxu0 0.0
    %308 = vmatprep.subr.mxu0 0.0
    %309 = vmatpush2.msra.mxu0 0.0
    %310 = vmatprep.subr.mxu0 0.0
    %311 = vmatpush2.msra.mxu0 0.0
    %312 = vmatprep.subr.mxu0 0.0
    %313 = vmatpush2.msra.mxu0 0.0
    %314 = vmatprep.subr.mxu0 0.0
    %315 = vmatpush2.msra.mxu0 0.0
    %316 = vmatprep.subr.mxu0 0.0
    %317 = vmatpush2.msra.mxu0 0.0
    %318 = vmatprep.subr.mxu0 0.0
    %319 = vmatpush2.msra.mxu0 0.0
    %320 = vmatprep.subr.mxu0 0.0
    %321 = vmatpush2.msra.mxu0 0.0
    %322 = vmatprep.subr.mxu0 0.0
    %323 = vmatpush2.msra.mxu0 0.0
    %324 = vmatprep.mubr.f32.mxu0 0.0
    %325 = vmatmul.mubr.f32.gmra.mxu0 %v258
    %v326 = vpop.f32.mrf.mxu0
    %v327 = vadd.f32 %v249, %v326
    %v328 = vpop.f32.mrf.mxu0
    %v329 = vadd.f32 %v253, %v328
    %330 = vdwg.mxu0
    %v331 = vadd.f32 %v124, %v327
    %v332 = vxor.u32 %v331, 2147483648
    %v333 = vmul.f32 %v332, 1.442695
    %v334 = vpow.pop %v333
    %v335 = vadd.f32 %v334, 1.0
    %v336 = vrcp.pop %v335
    %v337 = vmul.f32 1.0, %v336
    %339 = vrot.lane.b32.xlu0 %v327, 64
    %v340 = vpop.permute.xlu0 %339
    %v342 = vmul.f32 %v337, %v340
    %344 = vrot.lane.b32.xlu0 %v342, 64
    %v345 = vpop.permute.xlu0 %344
    %v347 = vadd.f32 %v124, %v345
    %v348 = vtanh.pop %v347
    %350 = vrot.lane.b32.xlu0 %v348, 64
    %v351 = vpop.permute.xlu0 %350
    %v353 = vsub.f32 %v256, %v351
    %355 = vrot.lane.b32.xlu0 %v353, 32
    %v356 = vpop.permute.xlu0 %355
    %v358 = vmul.f32 %v337, %v356
    %360 = vrot.lane.b32.xlu0 %v358, 32
    %v361 = vpop.permute.xlu0 %360
    %v363 = vadd.f32 %v348, %v361
    %365 = vrot.lane.b32.xlu0 %v363, 64
    %v366 = vpop.permute.xlu0 %365
    %v367 = vsel %vm132, %v366, 0
    %369 = vmatprep.subr.mxu0 0.0
    %370 = vmatpush1.msra.mxu0 0.0
    %371 = vmatprep.subr.mxu0 0.0
    %372 = vmatpush1.msra.mxu0 0.0
    %373 = vmatprep.subr.mxu0 0.0
    %374 = vmatpush1.msra.mxu0 0.0
    %375 = vmatprep.subr.mxu0 0.0
    %376 = vmatpush1.msra.mxu0 0.0
    %377 = vmatprep.subr.mxu0 0.0
    %378 = vmatpush1.msra.mxu0 0.0
    %379 = vmatprep.subr.mxu0 0.0
    %380 = vmatpush1.msra.mxu0 0.0
    %381 = vmatprep.subr.mxu0 0.0
    %382 = vmatpush1.msra.mxu0 0.0
    %383 = vmatprep.subr.mxu0 0.0
    %384 = vmatpush1.msra.mxu0 0.0
    %385 = vmatprep.subr.mxu0 0.0
    %386 = vmatpush1.msra.mxu0 0.0
    %387 = vmatprep.subr.mxu0 0.0
    %388 = vmatpush1.msra.mxu0 0.0
    %389 = vmatprep.subr.mxu0 0.0
    %390 = vmatpush1.msra.mxu0 0.0
    %391 = vmatprep.subr.mxu0 0.0
    %392 = vmatpush1.msra.mxu0 0.0
    %393 = vmatprep.subr.mxu0 0.0
    %394 = vmatpush1.msra.mxu0 %v241
    %395 = vmatprep.subr.mxu0 0.0
    %396 = vmatpush1.msra.mxu0 %v240
    %397 = vmatprep.subr.mxu0 0.0
    %398 = vmatpush1.msra.mxu0 %v239
    %399 = vmatprep.subr.mxu0 0.0
    %400 = vmatpush1.msra.mxu0 %v238
    %401 = vmatprep.subr.mxu0 0.0
    %402 = vmatpush2.msra.mxu0 0.0
    %403 = vmatprep.subr.mxu0 0.0
    %404 = vmatpush2.msra.mxu0 0.0
    %405 = vmatprep.subr.mxu0 0.0
    %406 = vmatpush2.msra.mxu0 0.0
    %407 = vmatprep.subr.mxu0 0.0
    %408 = vmatpush2.msra.mxu0 0.0
    %409 = vmatprep.subr.mxu0 0.0
    %410 = vmatpush2.msra.mxu0 0.0
    %411 = vmatprep.subr.mxu0 0.0
    %412 = vmatpush2.msra.mxu0 0.0
    %413 = vmatprep.subr.mxu0 0.0
    %414 = vmatpush2.msra.mxu0 0.0
    %415 = vmatprep.subr.mxu0 0.0
    %416 = vmatpush2.msra.mxu0 0.0
    %417 = vmatprep.subr.mxu0 0.0
    %418 = vmatpush2.msra.mxu0 0.0
    %419 = vmatprep.subr.mxu0 0.0
    %420 = vmatpush2.msra.mxu0 0.0
    %421 = vmatprep.subr.mxu0 0.0
    %422 = vmatpush2.msra.mxu0 0.0
    %423 = vmatprep.subr.mxu0 0.0
    %424 = vmatpush2.msra.mxu0 0.0
    %425 = vmatprep.subr.mxu0 0.0
    %426 = vmatpush2.msra.mxu0 0.0
    %427 = vmatprep.subr.mxu0 0.0
    %428 = vmatpush2.msra.mxu0 0.0
    %429 = vmatprep.subr.mxu0 0.0
    %430 = vmatpush2.msra.mxu0 0.0
    %431 = vmatprep.subr.mxu0 0.0
    %432 = vmatpush2.msra.mxu0 0.0
    %433 = vmatprep.mubr.f32.mxu0 0.0
    %434 = vmatmul.mubr.f32.gmra.mxu0 %v367
    %v435 = vpop.f32.mrf.mxu0
    %v436 = vadd.f32 %v242, %v435
    %v437 = vpop.f32.mrf.mxu0
    %438 = vdwg.mxu0
    %v440 = vrot.slane %v329, 4
    %v442 = vadd.f32 %v436, %v440
    %v443 = vxor.u32 %v442, 2147483648
    %v444 = vmul.f32 %v443, 1.442695
    %v445 = vpow.pop %v444
    %v446 = vadd.f32 %v445, 1.0
    %v447 = vrcp.pop %v446
    %v448 = vmul.f32 1.0, %v447
    %449 = vrot.lane.b32.xlu0 %v440, 64
    %v450 = vpop.permute.xlu0 %449
    %v452 = vmul.f32 %v448, %v450
    %454 = vrot.lane.b32.xlu0 %v452, 64
    %v455 = vpop.permute.xlu0 %454
    %v457 = vadd.f32 %v436, %v455
    %v458 = vtanh.pop %v457
    %v460 = vrot.slane %v458, 4
    %461 = vrot.lane.b32.xlu0 %v460, 64
    %v462 = vpop.permute.xlu0 %461
    %v464 = vsub.f32 %v256, %v462
    %v466 = vrot.slane %v464, 4
    %467 = vrot.lane.b32.xlu0 %v466, 32
    %v468 = vpop.permute.xlu0 %467
    %v470 = vmul.f32 %v448, %v468
    %472 = vrot.lane.b32.xlu0 %v470, 32
    %v473 = vpop.permute.xlu0 %472
    %v475 = vadd.f32 %v458, %v473
    %477 = vrot.lane.b32.xlu0 %v475, 64
    %v478 = vpop.permute.xlu0 %477
    %vm480 = vcmask 257024
    %481 = vst.msk [vmem:[#allocation2] sm:$0xf] %vm480, %v478
    %v482 = vrot.slane %v475, 4
    %vm484 = vcmask 1043456
    %v485 = vsel %vm484, %v363, %v482
    %487 = vrot.lane.b32.xlu0 %v485, 64
    %v488 = vpop.permute.xlu0 %487
    %v489 = vsel %vm132, %v488, 0
    %491 = vmatprep.subr.mxu0 0.0
    %492 = vmatpush1.msra.mxu0 0.0
    %493 = vmatprep.subr.mxu0 0.0
    %494 = vmatpush1.msra.mxu0 0.0
    %495 = vmatprep.subr.mxu0 0.0
    %496 = vmatpush1.msra.mxu0 0.0
    %497 = vmatprep.subr.mxu0 0.0
    %498 = vmatpush1.msra.mxu0 0.0
    %499 = vmatprep.subr.mxu0 0.0
    %500 = vmatpush1.msra.mxu0 0.0
    %501 = vmatprep.subr.mxu0 0.0
    %502 = vmatpush1.msra.mxu0 0.0
    %503 = vmatprep.subr.mxu0 0.0
    %504 = vmatpush1.msra.mxu0 0.0
    %505 = vmatprep.subr.mxu0 0.0
    %506 = vmatpush1.msra.mxu0 0.0
    %507 = vmatprep.subr.mxu0 0.0
    %508 = vmatpush1.msra.mxu0 0.0
    %509 = vmatprep.subr.mxu0 0.0
    %510 = vmatpush1.msra.mxu0 0.0
    %511 = vmatprep.subr.mxu0 0.0
    %512 = vmatpush1.msra.mxu0 0.0
    %513 = vmatprep.subr.mxu0 0.0
    %514 = vmatpush1.msra.mxu0 0.0
    %515 = vmatprep.subr.mxu0 %v237
    %516 = vmatpush1.msra.mxu0 %v236
    %517 = vmatprep.subr.mxu0 %v235
    %518 = vmatpush1.msra.mxu0 %v234
    %519 = vmatprep.subr.mxu0 %v233
    %520 = vmatpush1.msra.mxu0 %v232
    %521 = vmatprep.subr.mxu0 %v231
    %522 = vmatpush1.msra.mxu0 %v230
    %523 = vmatprep.subr.mxu0 0.0
    %524 = vmatpush2.msra.mxu0 0.0
    %525 = vmatprep.subr.mxu0 0.0
    %526 = vmatpush2.msra.mxu0 0.0
    %527 = vmatprep.subr.mxu0 0.0
    %528 = vmatpush2.msra.mxu0 0.0
    %529 = vmatprep.subr.mxu0 0.0
    %530 = vmatpush2.msra.mxu0 0.0
    %531 = vmatprep.subr.mxu0 0.0
    %532 = vmatpush2.msra.mxu0 0.0
    %533 = vmatprep.subr.mxu0 0.0
    %534 = vmatpush2.msra.mxu0 0.0
    %535 = vmatprep.subr.mxu0 0.0
    %536 = vmatpush2.msra.mxu0 0.0
    %537 = vmatprep.subr.mxu0 0.0
    %538 = vmatpush2.msra.mxu0 0.0
    %539 = vmatprep.subr.mxu0 0.0
    %540 = vmatpush2.msra.mxu0 0.0
    %541 = vmatprep.subr.mxu0 0.0
    %542 = vmatpush2.msra.mxu0 0.0
    %543 = vmatprep.subr.mxu0 0.0
    %544 = vmatpush2.msra.mxu0 0.0
    %545 = vmatprep.subr.mxu0 0.0
    %546 = vmatpush2.msra.mxu0 0.0
    %547 = vmatprep.subr.mxu0 0.0
    %548 = vmatpush2.msra.mxu0 0.0
    %549 = vmatprep.subr.mxu0 0.0
    %550 = vmatpush2.msra.mxu0 0.0
    %551 = vmatprep.subr.mxu0 0.0
    %552 = vmatpush2.msra.mxu0 0.0
    %553 = vmatprep.subr.mxu0 0.0
    %554 = vmatpush2.msra.mxu0 0.0
    %555 = vmatprep.mubr.f32.mxu0 0.0
    %556 = vmatmul.mubr.f32.gmra.mxu0 %v489
    %v557 = vpop.f32.mrf.mxu0
    %v558 = vadd.f32 %v249, %v557
    %v559 = vpop.f32.mrf.mxu0
    %v560 = vadd.f32 %v253, %v559
    %561 = vdwg.mxu0
    %v563 = vrot.slane %v558, 4
    %v565 = vadd.f32 %v124, %v563
    %v566 = vxor.u32 %v565, 2147483648
    %v567 = vmul.f32 %v566, 1.442695
    %v568 = vpow.pop %v567
    %v569 = vadd.f32 %v568, 1.0
    %v570 = vrcp.pop %v569
    %v571 = vmul.f32 1.0, %v570
    %572 = vrot.lane.b32.xlu0 %v563, 64
    %v573 = vpop.permute.xlu0 %572
    %v575 = vmul.f32 %v571, %v573
    %577 = vrot.lane.b32.xlu0 %v575, 64
    %v578 = vpop.permute.xlu0 %577
    %v580 = vadd.f32 %v124, %v578
    %v581 = vtanh.pop %v580
    %v583 = vrot.slane %v581, 4
    %v585 = vsub.f32 %v485, %v583
    %v587 = vrot.slane %v585, 4
    %588 = vrot.lane.b32.xlu0 %v587, 96
    %v589 = vpop.permute.xlu0 %588
    %v591 = vmul.f32 %v571, %v589
    %593 = vrot.lane.b32.xlu0 %v591, 32
    %v594 = vpop.permute.xlu0 %593
    %v596 = vadd.f32 %v581, %v594
    %v598 = vrot.slane %v596, 4
    %599 = vrot.lane.b32.xlu0 %v598, 64
    %v600 = vpop.permute.xlu0 %599
    %v601 = vsel %vm132, %v600, 0
    %603 = vmatprep.subr.mxu0 0.0
    %604 = vmatpush1.msra.mxu0 0.0
    %605 = vmatprep.subr.mxu0 0.0
    %606 = vmatpush1.msra.mxu0 0.0
    %607 = vmatprep.subr.mxu0 0.0
    %608 = vmatpush1.msra.mxu0 0.0
    %609 = vmatprep.subr.mxu0 0.0
    %610 = vmatpush1.msra.mxu0 0.0
    %611 = vmatprep.subr.mxu0 0.0
    %612 = vmatpush1.msra.mxu0 0.0
    %613 = vmatprep.subr.mxu0 0.0
    %614 = vmatpush1.msra.mxu0 0.0
    %615 = vmatprep.subr.mxu0 0.0
    %616 = vmatpush1.msra.mxu0 0.0
    %617 = vmatprep.subr.mxu0 0.0
    %618 = vmatpush1.msra.mxu0 0.0
    %619 = vmatprep.subr.mxu0 0.0
    %620 = vmatpush1.msra.mxu0 0.0
    %621 = vmatprep.subr.mxu0 0.0
    %622 = vmatpush1.msra.mxu0 0.0
    %623 = vmatprep.subr.mxu0 0.0
    %624 = vmatpush1.msra.mxu0 0.0
    %625 = vmatprep.subr.mxu0 0.0
    %626 = vmatpush1.msra.mxu0 0.0
    %627 = vmatprep.subr.mxu0 0.0
    %628 = vmatpush1.msra.mxu0 %v241
    %629 = vmatprep.subr.mxu0 0.0
    %630 = vmatpush1.msra.mxu0 %v240
    %631 = vmatprep.subr.mxu0 0.0
    %632 = vmatpush1.msra.mxu0 %v239
    %633 = vmatprep.subr.mxu0 0.0
    %634 = vmatpush1.msra.mxu0 %v238
    %635 = vmatprep.subr.mxu0 0.0
    %636 = vmatpush2.msra.mxu0 0.0
    %637 = vmatprep.subr.mxu0 0.0
    %638 = vmatpush2.msra.mxu0 0.0
    %639 = vmatprep.subr.mxu0 0.0
    %640 = vmatpush2.msra.mxu0 0.0
    %641 = vmatprep.subr.mxu0 0.0
    %642 = vmatpush2.msra.mxu0 0.0
    %643 = vmatprep.subr.mxu0 0.0
    %644 = vmatpush2.msra.mxu0 0.0
    %645 = vmatprep.subr.mxu0 0.0
    %646 = vmatpush2.msra.mxu0 0.0
    %647 = vmatprep.subr.mxu0 0.0
    %648 = vmatpush2.msra.mxu0 0.0
    %649 = vmatprep.subr.mxu0 0.0
    %650 = vmatpush2.msra.mxu0 0.0
    %651 = vmatprep.subr.mxu0 0.0
    %652 = vmatpush2.msra.mxu0 0.0
    %653 = vmatprep.subr.mxu0 0.0
    %654 = vmatpush2.msra.mxu0 0.0
    %655 = vmatprep.subr.mxu0 0.0
    %656 = vmatpush2.msra.mxu0 0.0
    %657 = vmatprep.subr.mxu0 0.0
    %658 = vmatpush2.msra.mxu0 0.0
    %659 = vmatprep.subr.mxu0 0.0
    %660 = vmatpush2.msra.mxu0 0.0
    %661 = vmatprep.subr.mxu0 0.0
    %662 = vmatpush2.msra.mxu0 0.0
    %663 = vmatprep.subr.mxu0 0.0
    %664 = vmatpush2.msra.mxu0 0.0
    %665 = vmatprep.subr.mxu0 0.0
    %666 = vmatpush2.msra.mxu0 0.0
    %667 = vmatprep.mubr.f32.mxu0 0.0
    %668 = vmatmul.mubr.f32.gmra.mxu0 %v601
    %v669 = vpop.f32.mrf.mxu0
    %v670 = vadd.f32 %v242, %v669
    %v671 = vpop.f32.mrf.mxu0
    %672 = vdwg.mxu0
    %v674 = vrot.slane %v560, 4
    %v676 = vadd.f32 %v670, %v674
    %v677 = vxor.u32 %v676, 2147483648
    %v678 = vmul.f32 %v677, 1.442695
    %v679 = vpow.pop %v678
    %v680 = vadd.f32 %v679, 1.0
    %v681 = vrcp.pop %v680
    %v682 = vmul.f32 1.0, %v681
    %683 = vrot.lane.b32.xlu0 %v674, 64
    %v684 = vpop.permute.xlu0 %683
    %v686 = vmul.f32 %v682, %v684
    %688 = vrot.lane.b32.xlu0 %v686, 64
    %v689 = vpop.permute.xlu0 %688
    %v691 = vadd.f32 %v670, %v689
    %v692 = vtanh.pop %v691
    %v694 = vrot.slane %v692, 4
    %v696 = vsub.f32 %v485, %v694
    %v698 = vrot.slane %v696, 4
    %699 = vrot.lane.b32.xlu0 %v698, 96
    %v700 = vpop.permute.xlu0 %699
    %v702 = vmul.f32 %v682, %v700
    %704 = vrot.lane.b32.xlu0 %v702, 32
    %v705 = vpop.permute.xlu0 %704
    %v707 = vadd.f32 %v692, %v705
    %709 = vrot.lane.b32.xlu0 %v707, 64
    %v710 = vpop.permute.xlu0 %709
    %712 = vst.msk [vmem:[#allocation2 + $0x4] sm:$0xf] %vm480, %v710
    %v714 = vrot.slane %v707, 4
    %v716 = vsel %vm484, %v598, %v714
    %718 = vrot.lane.b32.xlu0 %v716, 64
    %v719 = vpop.permute.xlu0 %718
    %v720 = vsel %vm132, %v719, 0
    %722 = vmatprep.subr.mxu0 0.0
    %723 = vmatpush1.msra.mxu0 0.0
    %724 = vmatprep.subr.mxu0 0.0
    %725 = vmatpush1.msra.mxu0 0.0
    %726 = vmatprep.subr.mxu0 0.0
    %727 = vmatpush1.msra.mxu0 0.0
    %728 = vmatprep.subr.mxu0 0.0
    %729 = vmatpush1.msra.mxu0 0.0
    %730 = vmatprep.subr.mxu0 0.0
    %731 = vmatpush1.msra.mxu0 0.0
    %732 = vmatprep.subr.mxu0 0.0
    %733 = vmatpush1.msra.mxu0 0.0
    %734 = vmatprep.subr.mxu0 0.0
    %735 = vmatpush1.msra.mxu0 0.0
    %736 = vmatprep.subr.mxu0 0.0
    %737 = vmatpush1.msra.mxu0 0.0
    %738 = vmatprep.subr.mxu0 0.0
    %739 = vmatpush1.msra.mxu0 0.0
    %740 = vmatprep.subr.mxu0 0.0
    %741 = vmatpush1.msra.mxu0 0.0
    %742 = vmatprep.subr.mxu0 0.0
    %743 = vmatpush1.msra.mxu0 0.0
    %744 = vmatprep.subr.mxu0 0.0
    %745 = vmatpush1.msra.mxu0 0.0
    %746 = vmatprep.subr.mxu0 %v237
    %747 = vmatpush1.msra.mxu0 %v236
    %748 = vmatprep.subr.mxu0 %v235
    %749 = vmatpush1.msra.mxu0 %v234
    %750 = vmatprep.subr.mxu0 %v233
    %751 = vmatpush1.msra.mxu0 %v232
    %752 = vmatprep.subr.mxu0 %v231
    %753 = vmatpush1.msra.mxu0 %v230
    %754 = vmatprep.subr.mxu0 0.0
    %755 = vmatpush2.msra.mxu0 0.0
    %756 = vmatprep.subr.mxu0 0.0
    %757 = vmatpush2.msra.mxu0 0.0
    %758 = vmatprep.subr.mxu0 0.0
    %759 = vmatpush2.msra.mxu0 0.0
    %760 = vmatprep.subr.mxu0 0.0
    %761 = vmatpush2.msra.mxu0 0.0
    %762 = vmatprep.subr.mxu0 0.0
    %763 = vmatpush2.msra.mxu0 0.0
    %764 = vmatprep.subr.mxu0 0.0
    %765 = vmatpush2.msra.mxu0 0.0
    %766 = vmatprep.subr.mxu0 0.0
    %767 = vmatpush2.msra.mxu0 0.0
    %768 = vmatprep.subr.mxu0 0.0
    %769 = vmatpush2.msra.mxu0 0.0
    %770 = vmatprep.subr.mxu0 0.0
    %771 = vmatpush2.msra.mxu0 0.0
    %772 = vmatprep.subr.mxu0 0.0
    %773 = vmatpush2.msra.mxu0 0.0
    %774 = vmatprep.subr.mxu0 0.0
    %775 = vmatpush2.msra.mxu0 0.0
    %776 = vmatprep.subr.mxu0 0.0
    %777 = vmatpush2.msra.mxu0 0.0
    %778 = vmatprep.subr.mxu0 0.0
    %779 = vmatpush2.msra.mxu0 0.0
    %780 = vmatprep.subr.mxu0 0.0
    %781 = vmatpush2.msra.mxu0 0.0
    %782 = vmatprep.subr.mxu0 0.0
    %783 = vmatpush2.msra.mxu0 0.0
    %784 = vmatprep.subr.mxu0 0.0
    %785 = vmatpush2.msra.mxu0 0.0
    %786 = vmatprep.mubr.f32.mxu0 0.0
    %787 = vmatmul.mubr.f32.gmra.mxu0 %v720
    %v788 = vpop.f32.mrf.mxu0
    %v789 = vadd.f32 %v249, %v788
    %v790 = vpop.f32.mrf.mxu0
    %v791 = vadd.f32 %v253, %v790
    %792 = vdwg.mxu0
    %v793 = vadd.f32 %v125, %v789
    %v794 = vxor.u32 %v793, 2147483648
    %v795 = vmul.f32 %v794, 1.442695
    %v796 = vpow.pop %v795
    %v797 = vadd.f32 %v796, 1.0
    %v798 = vrcp.pop %v797
    %v799 = vmul.f32 1.0, %v798
    %801 = vrot.lane.b32.xlu0 %v789, 64
    %v802 = vpop.permute.xlu0 %801
    %v804 = vmul.f32 %v799, %v802
    %806 = vrot.lane.b32.xlu0 %v804, 64
    %v807 = vpop.permute.xlu0 %806
    %v809 = vadd.f32 %v125, %v807
    %v810 = vtanh.pop %v809
    %v811 = vsub.f32 %v716, %v810
    %813 = vrot.lane.b32.xlu0 %v811, 96
    %v814 = vpop.permute.xlu0 %813
    %v816 = vmul.f32 %v799, %v814
    %818 = vrot.lane.b32.xlu0 %v816, 32
    %v819 = vpop.permute.xlu0 %818
    %v821 = vadd.f32 %v810, %v819
    %823 = vrot.lane.b32.xlu0 %v821, 64
    %v824 = vpop.permute.xlu0 %823
    %v825 = vsel %vm132, %v824, 0
    %827 = vmatprep.subr.mxu0 0.0
    %828 = vmatpush1.msra.mxu0 0.0
    %829 = vmatprep.subr.mxu0 0.0
    %830 = vmatpush1.msra.mxu0 0.0
    %831 = vmatprep.subr.mxu0 0.0
    %832 = vmatpush1.msra.mxu0 0.0
    %833 = vmatprep.subr.mxu0 0.0
    %834 = vmatpush1.msra.mxu0 0.0
    %835 = vmatprep.subr.mxu0 0.0
    %836 = vmatpush1.msra.mxu0 0.0
    %837 = vmatprep.subr.mxu0 0.0
    %838 = vmatpush1.msra.mxu0 0.0
    %839 = vmatprep.subr.mxu0 0.0
    %840 = vmatpush1.msra.mxu0 0.0
    %841 = vmatprep.subr.mxu0 0.0
    %842 = vmatpush1.msra.mxu0 0.0
    %843 = vmatprep.subr.mxu0 0.0
    %844 = vmatpush1.msra.mxu0 0.0
    %845 = vmatprep.subr.mxu0 0.0
    %846 = vmatpush1.msra.mxu0 0.0
    %847 = vmatprep.subr.mxu0 0.0
    %848 = vmatpush1.msra.mxu0 0.0
    %849 = vmatprep.subr.mxu0 0.0
    %850 = vmatpush1.msra.mxu0 0.0
    %851 = vmatprep.subr.mxu0 0.0
    %852 = vmatpush1.msra.mxu0 %v241
    %853 = vmatprep.subr.mxu0 0.0
    %854 = vmatpush1.msra.mxu0 %v240
    %855 = vmatprep.subr.mxu0 0.0
    %856 = vmatpush1.msra.mxu0 %v239
    %857 = vmatprep.subr.mxu0 0.0
    %858 = vmatpush1.msra.mxu0 %v238
    %859 = vmatprep.subr.mxu0 0.0
    %860 = vmatpush2.msra.mxu0 0.0
    %861 = vmatprep.subr.mxu0 0.0
    %862 = vmatpush2.msra.mxu0 0.0
    %863 = vmatprep.subr.mxu0 0.0
    %864 = vmatpush2.msra.mxu0 0.0
    %865 = vmatprep.subr.mxu0 0.0
    %866 = vmatpush2.msra.mxu0 0.0
    %867 = vmatprep.subr.mxu0 0.0
    %868 = vmatpush2.msra.mxu0 0.0
    %869 = vmatprep.subr.mxu0 0.0
    %870 = vmatpush2.msra.mxu0 0.0
    %871 = vmatprep.subr.mxu0 0.0
    %872 = vmatpush2.msra.mxu0 0.0
    %873 = vmatprep.subr.mxu0 0.0
    %874 = vmatpush2.msra.mxu0 0.0
    %875 = vmatprep.subr.mxu0 0.0
    %876 = vmatpush2.msra.mxu0 0.0
    %877 = vmatprep.subr.mxu0 0.0
    %878 = vmatpush2.msra.mxu0 0.0
    %879 = vmatprep.subr.mxu0 0.0
    %880 = vmatpush2.msra.mxu0 0.0
    %881 = vmatprep.subr.mxu0 0.0
    %882 = vmatpush2.msra.mxu0 0.0
    %883 = vmatprep.subr.mxu0 0.0
    %884 = vmatpush2.msra.mxu0 0.0
    %885 = vmatprep.subr.mxu0 0.0
    %886 = vmatpush2.msra.mxu0 0.0
    %887 = vmatprep.subr.mxu0 0.0
    %888 = vmatpush2.msra.mxu0 0.0
    %889 = vmatprep.subr.mxu0 0.0
    %890 = vmatpush2.msra.mxu0 0.0
    %891 = vmatprep.mubr.f32.mxu0 0.0
    %892 = vmatmul.mubr.f32.gmra.mxu0 %v825
    %v893 = vpop.f32.mrf.mxu0
    %v894 = vadd.f32 %v242, %v893
    %v895 = vpop.f32.mrf.mxu0
    %896 = vdwg.mxu0
    %v898 = vrot.slane %v791, 4
    %v900 = vadd.f32 %v894, %v898
    %v901 = vxor.u32 %v900, 2147483648
    %v902 = vmul.f32 %v901, 1.442695
    %v903 = vpow.pop %v902
    %v904 = vadd.f32 %v903, 1.0
    %v905 = vrcp.pop %v904
    %v906 = vmul.f32 1.0, %v905
    %907 = vrot.lane.b32.xlu0 %v898, 64
    %v908 = vpop.permute.xlu0 %907
    %v910 = vmul.f32 %v906, %v908
    %912 = vrot.lane.b32.xlu0 %v910, 64
    %v913 = vpop.permute.xlu0 %912
    %v915 = vadd.f32 %v894, %v913
    %v916 = vtanh.pop %v915
    %v918 = vrot.slane %v916, 4
    %v920 = vsub.f32 %v716, %v918
    %v922 = vrot.slane %v920, 4
    %923 = vrot.lane.b32.xlu0 %v922, 96
    %v924 = vpop.permute.xlu0 %923
    %v926 = vmul.f32 %v906, %v924
    %928 = vrot.lane.b32.xlu0 %v926, 32
    %v929 = vpop.permute.xlu0 %928
    %v931 = vadd.f32 %v916, %v929
    %933 = vrot.lane.b32.xlu0 %v931, 64
    %v934 = vpop.permute.xlu0 %933
    %936 = vst.msk [vmem:[#allocation2 + $0x8] sm:$0xf] %vm480, %v934
    %v937 = vrot.slane %v931, 4
    %v939 = vsel %vm484, %v821, %v937
    %941 = vrot.lane.b32.xlu0 %v939, 64
    %v942 = vpop.permute.xlu0 %941
    %v943 = vsel %vm132, %v942, 0
    %945 = vmatprep.subr.mxu0 0.0
    %946 = vmatpush1.msra.mxu0 0.0
    %947 = vmatprep.subr.mxu0 0.0
    %948 = vmatpush1.msra.mxu0 0.0
    %949 = vmatprep.subr.mxu0 0.0
    %950 = vmatpush1.msra.mxu0 0.0
    %951 = vmatprep.subr.mxu0 0.0
    %952 = vmatpush1.msra.mxu0 0.0
    %953 = vmatprep.subr.mxu0 0.0
    %954 = vmatpush1.msra.mxu0 0.0
    %955 = vmatprep.subr.mxu0 0.0
    %956 = vmatpush1.msra.mxu0 0.0
    %957 = vmatprep.subr.mxu0 0.0
    %958 = vmatpush1.msra.mxu0 0.0
    %959 = vmatprep.subr.mxu0 0.0
    %960 = vmatpush1.msra.mxu0 0.0
    %961 = vmatprep.subr.mxu0 0.0
    %962 = vmatpush1.msra.mxu0 0.0
    %963 = vmatprep.subr.mxu0 0.0
    %964 = vmatpush1.msra.mxu0 0.0
    %965 = vmatprep.subr.mxu0 0.0
    %966 = vmatpush1.msra.mxu0 0.0
    %967 = vmatprep.subr.mxu0 0.0
    %968 = vmatpush1.msra.mxu0 0.0
    %969 = vmatprep.subr.mxu0 %v237
    %970 = vmatpush1.msra.mxu0 %v236
    %971 = vmatprep.subr.mxu0 %v235
    %972 = vmatpush1.msra.mxu0 %v234
    %973 = vmatprep.subr.mxu0 %v233
    %974 = vmatpush1.msra.mxu0 %v232
    %975 = vmatprep.subr.mxu0 %v231
    %976 = vmatpush1.msra.mxu0 %v230
    %977 = vmatprep.subr.mxu0 0.0
    %978 = vmatpush2.msra.mxu0 0.0
    %979 = vmatprep.subr.mxu0 0.0
    %980 = vmatpush2.msra.mxu0 0.0
    %981 = vmatprep.subr.mxu0 0.0
    %982 = vmatpush2.msra.mxu0 0.0
    %983 = vmatprep.subr.mxu0 0.0
    %984 = vmatpush2.msra.mxu0 0.0
    %985 = vmatprep.subr.mxu0 0.0
    %986 = vmatpush2.msra.mxu0 0.0
    %987 = vmatprep.subr.mxu0 0.0
    %988 = vmatpush2.msra.mxu0 0.0
    %989 = vmatprep.subr.mxu0 0.0
    %990 = vmatpush2.msra.mxu0 0.0
    %991 = vmatprep.subr.mxu0 0.0
    %992 = vmatpush2.msra.mxu0 0.0
    %993 = vmatprep.subr.mxu0 0.0
    %994 = vmatpush2.msra.mxu0 0.0
    %995 = vmatprep.subr.mxu0 0.0
    %996 = vmatpush2.msra.mxu0 0.0
    %997 = vmatprep.subr.mxu0 0.0
    %998 = vmatpush2.msra.mxu0 0.0
    %999 = vmatprep.subr.mxu0 0.0
    %1000 = vmatpush2.msra.mxu0 0.0
    %1001 = vmatprep.subr.mxu0 0.0
    %1002 = vmatpush2.msra.mxu0 0.0
    %1003 = vmatprep.subr.mxu0 0.0
    %1004 = vmatpush2.msra.mxu0 0.0
    %1005 = vmatprep.subr.mxu0 0.0
    %1006 = vmatpush2.msra.mxu0 0.0
    %1007 = vmatprep.subr.mxu0 0.0
    %1008 = vmatpush2.msra.mxu0 0.0
    %1009 = vmatprep.mubr.f32.mxu0 0.0
    %1010 = vmatmul.mubr.f32.gmra.mxu0 %v943
    %v1011 = vpop.f32.mrf.mxu0
    %v1012 = vadd.f32 %v249, %v1011
    %v1013 = vpop.f32.mrf.mxu0
    %v1014 = vadd.f32 %v253, %v1013
    %1015 = vdwg.mxu0
    %v1017 = vrot.slane %v1012, 4
    %v1019 = vadd.f32 %v125, %v1017
    %v1020 = vxor.u32 %v1019, 2147483648
    %v1021 = vmul.f32 %v1020, 1.442695
    %v1022 = vpow.pop %v1021
    %v1023 = vadd.f32 %v1022, 1.0
    %v1024 = vrcp.pop %v1023
    %v1025 = vmul.f32 1.0, %v1024
    %1026 = vrot.lane.b32.xlu0 %v1017, 64
    %v1027 = vpop.permute.xlu0 %1026
    %v1029 = vmul.f32 %v1025, %v1027
    %1031 = vrot.lane.b32.xlu0 %v1029, 64
    %v1032 = vpop.permute.xlu0 %1031
    %v1034 = vadd.f32 %v125, %v1032
    %v1035 = vtanh.pop %v1034
    %v1037 = vrot.slane %v1035, 4
    %v1039 = vsub.f32 %v939, %v1037
    %v1041 = vrot.slane %v1039, 4
    %1042 = vrot.lane.b32.xlu0 %v1041, 96
    %v1043 = vpop.permute.xlu0 %1042
    %v1045 = vmul.f32 %v1025, %v1043
    %1047 = vrot.lane.b32.xlu0 %v1045, 32
    %v1048 = vpop.permute.xlu0 %1047
    %v1050 = vadd.f32 %v1035, %v1048
    %v1052 = vrot.slane %v1050, 4
    %1053 = vrot.lane.b32.xlu0 %v1052, 64
    %v1054 = vpop.permute.xlu0 %1053
    %v1055 = vsel %vm132, %v1054, 0
    %1057 = vmatprep.subr.mxu0 0.0
    %1058 = vmatpush1.msra.mxu0 0.0
    %1059 = vmatprep.subr.mxu0 0.0
    %1060 = vmatpush1.msra.mxu0 0.0
    %1061 = vmatprep.subr.mxu0 0.0
    %1062 = vmatpush1.msra.mxu0 0.0
    %1063 = vmatprep.subr.mxu0 0.0
    %1064 = vmatpush1.msra.mxu0 0.0
    %1065 = vmatprep.subr.mxu0 0.0
    %1066 = vmatpush1.msra.mxu0 0.0
    %1067 = vmatprep.subr.mxu0 0.0
    %1068 = vmatpush1.msra.mxu0 0.0
    %1069 = vmatprep.subr.mxu0 0.0
    %1070 = vmatpush1.msra.mxu0 0.0
    %1071 = vmatprep.subr.mxu0 0.0
    %1072 = vmatpush1.msra.mxu0 0.0
    %1073 = vmatprep.subr.mxu0 0.0
    %1074 = vmatpush1.msra.mxu0 0.0
    %1075 = vmatprep.subr.mxu0 0.0
    %1076 = vmatpush1.msra.mxu0 0.0
    %1077 = vmatprep.subr.mxu0 0.0
    %1078 = vmatpush1.msra.mxu0 0.0
    %1079 = vmatprep.subr.mxu0 0.0
    %1080 = vmatpush1.msra.mxu0 0.0
    %1081 = vmatprep.subr.mxu0 0.0
    %1082 = vmatpush1.msra.mxu0 %v241
    %1083 = vmatprep.subr.mxu0 0.0
    %1084 = vmatpush1.msra.mxu0 %v240
    %1085 = vmatprep.subr.mxu0 0.0
    %1086 = vmatpush1.msra.mxu0 %v239
    %1087 = vmatprep.subr.mxu0 0.0
    %1088 = vmatpush1.msra.mxu0 %v238
    %1089 = vmatprep.subr.mxu0 0.0
    %1090 = vmatpush2.msra.mxu0 0.0
    %1091 = vmatprep.subr.mxu0 0.0
    %1092 = vmatpush2.msra.mxu0 0.0
    %1093 = vmatprep.subr.mxu0 0.0
    %1094 = vmatpush2.msra.mxu0 0.0
    %1095 = vmatprep.subr.mxu0 0.0
    %1096 = vmatpush2.msra.mxu0 0.0
    %1097 = vmatprep.subr.mxu0 0.0
    %1098 = vmatpush2.msra.mxu0 0.0
    %1099 = vmatprep.subr.mxu0 0.0
    %1100 = vmatpush2.msra.mxu0 0.0
    %1101 = vmatprep.subr.mxu0 0.0
    %1102 = vmatpush2.msra.mxu0 0.0
    %1103 = vmatprep.subr.mxu0 0.0
    %1104 = vmatpush2.msra.mxu0 0.0
    %1105 = vmatprep.subr.mxu0 0.0
    %1106 = vmatpush2.msra.mxu0 0.0
    %1107 = vmatprep.subr.mxu0 0.0
    %1108 = vmatpush2.msra.mxu0 0.0
    %1109 = vmatprep.subr.mxu0 0.0
    %1110 = vmatpush2.msra.mxu0 0.0
    %1111 = vmatprep.subr.mxu0 0.0
    %1112 = vmatpush2.msra.mxu0 0.0
    %1113 = vmatprep.subr.mxu0 0.0
    %1114 = vmatpush2.msra.mxu0 0.0
    %1115 = vmatprep.subr.mxu0 0.0
    %1116 = vmatpush2.msra.mxu0 0.0
    %1117 = vmatprep.subr.mxu0 0.0
    %1118 = vmatpush2.msra.mxu0 0.0
    %1119 = vmatprep.subr.mxu0 0.0
    %1120 = vmatpush2.msra.mxu0 0.0
    %1121 = vmatprep.mubr.f32.mxu0 0.0
    %1122 = vmatmul.mubr.f32.gmra.mxu0 %v1055
    %v1123 = vpop.f32.mrf.mxu0
    %v1124 = vadd.f32 %v242, %v1123
    %v1125 = vpop.f32.mrf.mxu0
    %1126 = vdwg.mxu0
    %v1128 = vrot.slane %v1014, 4
    %v1130 = vadd.f32 %v1124, %v1128
    %v1131 = vxor.u32 %v1130, 2147483648
    %v1132 = vmul.f32 %v1131, 1.442695
    %v1133 = vpow.pop %v1132
    %v1134 = vadd.f32 %v1133, 1.0
    %v1135 = vrcp.pop %v1134
    %v1136 = vmul.f32 1.0, %v1135
    %1137 = vrot.lane.b32.xlu0 %v1128, 64
    %v1138 = vpop.permute.xlu0 %1137
    %v1140 = vmul.f32 %v1136, %v1138
    %1142 = vrot.lane.b32.xlu0 %v1140, 64
    %v1143 = vpop.permute.xlu0 %1142
    %v1145 = vadd.f32 %v1124, %v1143
    %v1146 = vtanh.pop %v1145
    %v1148 = vrot.slane %v1146, 4
    %v1150 = vsub.f32 %v939, %v1148
    %v1152 = vrot.slane %v1150, 4
    %1153 = vrot.lane.b32.xlu0 %v1152, 96
    %v1154 = vpop.permute.xlu0 %1153
    %v1156 = vmul.f32 %v1136, %v1154
    %1158 = vrot.lane.b32.xlu0 %v1156, 32
    %v1159 = vpop.permute.xlu0 %1158
    %v1161 = vadd.f32 %v1146, %v1159
    %1163 = vrot.lane.b32.xlu0 %v1161, 64
    %v1164 = vpop.permute.xlu0 %1163
    %1166 = vst.msk [vmem:[#allocation2 + $0xc] sm:$0xf] %vm480, %v1164
    %v1168 = vrot.slane %v1161, 4
    %v1170 = vsel %vm484, %v1052, %v1168
    %1172 = vrot.lane.b32.xlu0 %v1170, 64
    %v1173 = vpop.permute.xlu0 %1172
    %v1174 = vsel %vm132, %v1173, 0
    %1176 = vmatprep.subr.mxu0 0.0
    %1177 = vmatpush1.msra.mxu0 0.0
    %1178 = vmatprep.subr.mxu0 0.0
    %1179 = vmatpush1.msra.mxu0 0.0
    %1180 = vmatprep.subr.mxu0 0.0
    %1181 = vmatpush1.msra.mxu0 0.0
    %1182 = vmatprep.subr.mxu0 0.0
    %1183 = vmatpush1.msra.mxu0 0.0
    %1184 = vmatprep.subr.mxu0 0.0
    %1185 = vmatpush1.msra.mxu0 0.0
    %1186 = vmatprep.subr.mxu0 0.0
    %1187 = vmatpush1.msra.mxu0 0.0
    %1188 = vmatprep.subr.mxu0 0.0
    %1189 = vmatpush1.msra.mxu0 0.0
    %1190 = vmatprep.subr.mxu0 0.0
    %1191 = vmatpush1.msra.mxu0 0.0
    %1192 = vmatprep.subr.mxu0 0.0
    %1193 = vmatpush1.msra.mxu0 0.0
    %1194 = vmatprep.subr.mxu0 0.0
    %1195 = vmatpush1.msra.mxu0 0.0
    %1196 = vmatprep.subr.mxu0 0.0
    %1197 = vmatpush1.msra.mxu0 0.0
    %1198 = vmatprep.subr.mxu0 0.0
    %1199 = vmatpush1.msra.mxu0 0.0
    %1200 = vmatprep.subr.mxu0 %v237
    %1201 = vmatpush1.msra.mxu0 %v236
    %1202 = vmatprep.subr.mxu0 %v235
    %1203 = vmatpush1.msra.mxu0 %v234
    %1204 = vmatprep.subr.mxu0 %v233
    %1205 = vmatpush1.msra.mxu0 %v232
    %1206 = vmatprep.subr.mxu0 %v231
    %1207 = vmatpush1.msra.mxu0 %v230
    %1208 = vmatprep.subr.mxu0 0.0
    %1209 = vmatpush2.msra.mxu0 0.0
    %1210 = vmatprep.subr.mxu0 0.0
    %1211 = vmatpush2.msra.mxu0 0.0
    %1212 = vmatprep.subr.mxu0 0.0
    %1213 = vmatpush2.msra.mxu0 0.0
    %1214 = vmatprep.subr.mxu0 0.0
    %1215 = vmatpush2.msra.mxu0 0.0
    %1216 = vmatprep.subr.mxu0 0.0
    %1217 = vmatpush2.msra.mxu0 0.0
    %1218 = vmatprep.subr.mxu0 0.0
    %1219 = vmatpush2.msra.mxu0 0.0
    %1220 = vmatprep.subr.mxu0 0.0
    %1221 = vmatpush2.msra.mxu0 0.0
    %1222 = vmatprep.subr.mxu0 0.0
    %1223 = vmatpush2.msra.mxu0 0.0
    %1224 = vmatprep.subr.mxu0 0.0
    %1225 = vmatpush2.msra.mxu0 0.0
    %1226 = vmatprep.subr.mxu0 0.0
    %1227 = vmatpush2.msra.mxu0 0.0
    %1228 = vmatprep.subr.mxu0 0.0
    %1229 = vmatpush2.msra.mxu0 0.0
    %1230 = vmatprep.subr.mxu0 0.0
    %1231 = vmatpush2.msra.mxu0 0.0
    %1232 = vmatprep.subr.mxu0 0.0
    %1233 = vmatpush2.msra.mxu0 0.0
    %1234 = vmatprep.subr.mxu0 0.0
    %1235 = vmatpush2.msra.mxu0 0.0
    %1236 = vmatprep.subr.mxu0 0.0
    %1237 = vmatpush2.msra.mxu0 0.0
    %1238 = vmatprep.subr.mxu0 0.0
    %1239 = vmatpush2.msra.mxu0 0.0
    %1240 = vmatprep.mubr.f32.mxu0 0.0
    %1241 = vmatmul.mubr.f32.gmra.mxu0 %v1174
    %v1242 = vpop.f32.mrf.mxu0
    %v1243 = vadd.f32 %v249, %v1242
    %v1244 = vpop.f32.mrf.mxu0
    %v1245 = vadd.f32 %v253, %v1244
    %1246 = vdwg.mxu0
    %v1247 = vadd.f32 %v126, %v1243
    %v1248 = vxor.u32 %v1247, 2147483648
    %v1249 = vmul.f32 %v1248, 1.442695
    %v1250 = vpow.pop %v1249
    %v1251 = vadd.f32 %v1250, 1.0
    %v1252 = vrcp.pop %v1251
    %v1253 = vmul.f32 1.0, %v1252
    %1255 = vrot.lane.b32.xlu0 %v1243, 64
    %v1256 = vpop.permute.xlu0 %1255
    %v1258 = vmul.f32 %v1253, %v1256
    %1260 = vrot.lane.b32.xlu0 %v1258, 64
    %v1261 = vpop.permute.xlu0 %1260
    %v1263 = vadd.f32 %v126, %v1261
    %v1264 = vtanh.pop %v1263
    %v1265 = vsub.f32 %v1170, %v1264
    %1267 = vrot.lane.b32.xlu0 %v1265, 96
    %v1268 = vpop.permute.xlu0 %1267
    %v1270 = vmul.f32 %v1253, %v1268
    %1272 = vrot.lane.b32.xlu0 %v1270, 32
    %v1273 = vpop.permute.xlu0 %1272
    %v1275 = vadd.f32 %v1264, %v1273
    %1277 = vrot.lane.b32.xlu0 %v1275, 64
    %v1278 = vpop.permute.xlu0 %1277
    %v1279 = vsel %vm132, %v1278, 0
    %1281 = vmatprep.subr.mxu0 0.0
    %1282 = vmatpush1.msra.mxu0 0.0
    %1283 = vmatprep.subr.mxu0 0.0
    %1284 = vmatpush1.msra.mxu0 0.0
    %1285 = vmatprep.subr.mxu0 0.0
    %1286 = vmatpush1.msra.mxu0 0.0
    %1287 = vmatprep.subr.mxu0 0.0
    %1288 = vmatpush1.msra.mxu0 0.0
    %1289 = vmatprep.subr.mxu0 0.0
    %1290 = vmatpush1.msra.mxu0 0.0
    %1291 = vmatprep.subr.mxu0 0.0
    %1292 = vmatpush1.msra.mxu0 0.0
    %1293 = vmatprep.subr.mxu0 0.0
    %1294 = vmatpush1.msra.mxu0 0.0
    %1295 = vmatprep.subr.mxu0 0.0
    %1296 = vmatpush1.msra.mxu0 0.0
    %1297 = vmatprep.subr.mxu0 0.0
    %1298 = vmatpush1.msra.mxu0 0.0
    %1299 = vmatprep.subr.mxu0 0.0
    %1300 = vmatpush1.msra.mxu0 0.0
    %1301 = vmatprep.subr.mxu0 0.0
    %1302 = vmatpush1.msra.mxu0 0.0
    %1303 = vmatprep.subr.mxu0 0.0
    %1304 = vmatpush1.msra.mxu0 0.0
    %1305 = vmatprep.subr.mxu0 0.0
    %1306 = vmatpush1.msra.mxu0 %v241
    %1307 = vmatprep.subr.mxu0 0.0
    %1308 = vmatpush1.msra.mxu0 %v240
    %1309 = vmatprep.subr.mxu0 0.0
    %1310 = vmatpush1.msra.mxu0 %v239
    %1311 = vmatprep.subr.mxu0 0.0
    %1312 = vmatpush1.msra.mxu0 %v238
    %1313 = vmatprep.subr.mxu0 0.0
    %1314 = vmatpush2.msra.mxu0 0.0
    %1315 = vmatprep.subr.mxu0 0.0
    %1316 = vmatpush2.msra.mxu0 0.0
    %1317 = vmatprep.subr.mxu0 0.0
    %1318 = vmatpush2.msra.mxu0 0.0
    %1319 = vmatprep.subr.mxu0 0.0
    %1320 = vmatpush2.msra.mxu0 0.0
    %1321 = vmatprep.subr.mxu0 0.0
    %1322 = vmatpush2.msra.mxu0 0.0
    %1323 = vmatprep.subr.mxu0 0.0
    %1324 = vmatpush2.msra.mxu0 0.0
    %1325 = vmatprep.subr.mxu0 0.0
    %1326 = vmatpush2.msra.mxu0 0.0
    %1327 = vmatprep.subr.mxu0 0.0
    %1328 = vmatpush2.msra.mxu0 0.0
    %1329 = vmatprep.subr.mxu0 0.0
    %1330 = vmatpush2.msra.mxu0 0.0
    %1331 = vmatprep.subr.mxu0 0.0
    %1332 = vmatpush2.msra.mxu0 0.0
    %1333 = vmatprep.subr.mxu0 0.0
    %1334 = vmatpush2.msra.mxu0 0.0
    %1335 = vmatprep.subr.mxu0 0.0
    %1336 = vmatpush2.msra.mxu0 0.0
    %1337 = vmatprep.subr.mxu0 0.0
    %1338 = vmatpush2.msra.mxu0 0.0
    %1339 = vmatprep.subr.mxu0 0.0
    %1340 = vmatpush2.msra.mxu0 0.0
    %1341 = vmatprep.subr.mxu0 0.0
    %1342 = vmatpush2.msra.mxu0 0.0
    %1343 = vmatprep.subr.mxu0 0.0
    %1344 = vmatpush2.msra.mxu0 0.0
    %1345 = vmatprep.mubr.f32.mxu0 0.0
    %1346 = vmatmul.mubr.f32.gmra.mxu0 %v1279
    %v1347 = vpop.f32.mrf.mxu0
    %v1348 = vadd.f32 %v242, %v1347
    %v1349 = vpop.f32.mrf.mxu0
    %1350 = vdwg.mxu0
    %v1352 = vrot.slane %v1245, 4
    %v1354 = vadd.f32 %v1348, %v1352
    %v1355 = vxor.u32 %v1354, 2147483648
    %v1356 = vmul.f32 %v1355, 1.442695
    %v1357 = vpow.pop %v1356
    %v1358 = vadd.f32 %v1357, 1.0
    %v1359 = vrcp.pop %v1358
    %v1360 = vmul.f32 1.0, %v1359
    %1361 = vrot.lane.b32.xlu0 %v1352, 64
    %v1362 = vpop.permute.xlu0 %1361
    %v1364 = vmul.f32 %v1360, %v1362
    %1366 = vrot.lane.b32.xlu0 %v1364, 64
    %v1367 = vpop.permute.xlu0 %1366
    %v1369 = vadd.f32 %v1348, %v1367
    %v1370 = vtanh.pop %v1369
    %v1372 = vrot.slane %v1370, 4
    %v1374 = vsub.f32 %v1170, %v1372
    %v1376 = vrot.slane %v1374, 4
    %1377 = vrot.lane.b32.xlu0 %v1376, 96
    %v1378 = vpop.permute.xlu0 %1377
    %v1380 = vmul.f32 %v1360, %v1378
    %1382 = vrot.lane.b32.xlu0 %v1380, 32
    %v1383 = vpop.permute.xlu0 %1382
    %v1385 = vadd.f32 %v1370, %v1383
    %1387 = vrot.lane.b32.xlu0 %v1385, 64
    %v1388 = vpop.permute.xlu0 %1387
    %1390 = vst.msk [vmem:[#allocation2 + $0x10] sm:$0xf] %vm480, %v1388
    %v1391 = vrot.slane %v1385, 4
    %v1393 = vsel %vm484, %v1275, %v1391
    %1395 = vrot.lane.b32.xlu0 %v1393, 64
    %v1396 = vpop.permute.xlu0 %1395
    %v1397 = vsel %vm132, %v1396, 0
    %1399 = vmatprep.subr.mxu0 0.0
    %1400 = vmatpush1.msra.mxu0 0.0
    %1401 = vmatprep.subr.mxu0 0.0
    %1402 = vmatpush1.msra.mxu0 0.0
    %1403 = vmatprep.subr.mxu0 0.0
    %1404 = vmatpush1.msra.mxu0 0.0
    %1405 = vmatprep.subr.mxu0 0.0
    %1406 = vmatpush1.msra.mxu0 0.0
    %1407 = vmatprep.subr.mxu0 0.0
    %1408 = vmatpush1.msra.mxu0 0.0
    %1409 = vmatprep.subr.mxu0 0.0
    %1410 = vmatpush1.msra.mxu0 0.0
    %1411 = vmatprep.subr.mxu0 0.0
    %1412 = vmatpush1.msra.mxu0 0.0
    %1413 = vmatprep.subr.mxu0 0.0
    %1414 = vmatpush1.msra.mxu0 0.0
    %1415 = vmatprep.subr.mxu0 0.0
    %1416 = vmatpush1.msra.mxu0 0.0
    %1417 = vmatprep.subr.mxu0 0.0
    %1418 = vmatpush1.msra.mxu0 0.0
    %1419 = vmatprep.subr.mxu0 0.0
    %1420 = vmatpush1.msra.mxu0 0.0
    %1421 = vmatprep.subr.mxu0 0.0
    %1422 = vmatpush1.msra.mxu0 0.0
    %1423 = vmatprep.subr.mxu0 %v237
    %1424 = vmatpush1.msra.mxu0 %v236
    %1425 = vmatprep.subr.mxu0 %v235
    %1426 = vmatpush1.msra.mxu0 %v234
    %1427 = vmatprep.subr.mxu0 %v233
    %1428 = vmatpush1.msra.mxu0 %v232
    %1429 = vmatprep.subr.mxu0 %v231
    %1430 = vmatpush1.msra.mxu0 %v230
    %1431 = vmatprep.subr.mxu0 0.0
    %1432 = vmatpush2.msra.mxu0 0.0
    %1433 = vmatprep.subr.mxu0 0.0
    %1434 = vmatpush2.msra.mxu0 0.0
    %1435 = vmatprep.subr.mxu0 0.0
    %1436 = vmatpush2.msra.mxu0 0.0
    %1437 = vmatprep.subr.mxu0 0.0
    %1438 = vmatpush2.msra.mxu0 0.0
    %1439 = vmatprep.subr.mxu0 0.0
    %1440 = vmatpush2.msra.mxu0 0.0
    %1441 = vmatprep.subr.mxu0 0.0
    %1442 = vmatpush2.msra.mxu0 0.0
    %1443 = vmatprep.subr.mxu0 0.0
    %1444 = vmatpush2.msra.mxu0 0.0
    %1445 = vmatprep.subr.mxu0 0.0
    %1446 = vmatpush2.msra.mxu0 0.0
    %1447 = vmatprep.subr.mxu0 0.0
    %1448 = vmatpush2.msra.mxu0 0.0
    %1449 = vmatprep.subr.mxu0 0.0
    %1450 = vmatpush2.msra.mxu0 0.0
    %1451 = vmatprep.subr.mxu0 0.0
    %1452 = vmatpush2.msra.mxu0 0.0
    %1453 = vmatprep.subr.mxu0 0.0
    %1454 = vmatpush2.msra.mxu0 0.0
    %1455 = vmatprep.subr.mxu0 0.0
    %1456 = vmatpush2.msra.mxu0 0.0
    %1457 = vmatprep.subr.mxu0 0.0
    %1458 = vmatpush2.msra.mxu0 0.0
    %1459 = vmatprep.subr.mxu0 0.0
    %1460 = vmatpush2.msra.mxu0 0.0
    %1461 = vmatprep.subr.mxu0 0.0
    %1462 = vmatpush2.msra.mxu0 0.0
    %1463 = vmatprep.mubr.f32.mxu0 0.0
    %1464 = vmatmul.mubr.f32.gmra.mxu0 %v1397
    %v1465 = vpop.f32.mrf.mxu0
    %v1466 = vadd.f32 %v249, %v1465
    %v1467 = vpop.f32.mrf.mxu0
    %v1468 = vadd.f32 %v253, %v1467
    %1469 = vdwg.mxu0
    %v1471 = vrot.slane %v1466, 4
    %v1473 = vadd.f32 %v126, %v1471
    %v1474 = vxor.u32 %v1473, 2147483648
    %v1475 = vmul.f32 %v1474, 1.442695
    %v1476 = vpow.pop %v1475
    %v1477 = vadd.f32 %v1476, 1.0
    %v1478 = vrcp.pop %v1477
    %v1479 = vmul.f32 1.0, %v1478
    %1480 = vrot.lane.b32.xlu0 %v1471, 64
    %v1481 = vpop.permute.xlu0 %1480
    %v1483 = vmul.f32 %v1479, %v1481
    %1485 = vrot.lane.b32.xlu0 %v1483, 64
    %v1486 = vpop.permute.xlu0 %1485
    %v1488 = vadd.f32 %v126, %v1486
    %v1489 = vtanh.pop %v1488
    %v1491 = vrot.slane %v1489, 4
    %v1493 = vsub.f32 %v1393, %v1491
    %v1495 = vrot.slane %v1493, 4
    %1496 = vrot.lane.b32.xlu0 %v1495, 96
    %v1497 = vpop.permute.xlu0 %1496
    %v1499 = vmul.f32 %v1479, %v1497
    %1501 = vrot.lane.b32.xlu0 %v1499, 32
    %v1502 = vpop.permute.xlu0 %1501
    %v1504 = vadd.f32 %v1489, %v1502
    %v1506 = vrot.slane %v1504, 4
    %1507 = vrot.lane.b32.xlu0 %v1506, 64
    %v1508 = vpop.permute.xlu0 %1507
    %v1509 = vsel %vm132, %v1508, 0
    %1511 = vmatprep.subr.mxu0 0.0
    %1512 = vmatpush1.msra.mxu0 0.0
    %1513 = vmatprep.subr.mxu0 0.0
    %1514 = vmatpush1.msra.mxu0 0.0
    %1515 = vmatprep.subr.mxu0 0.0
    %1516 = vmatpush1.msra.mxu0 0.0
    %1517 = vmatprep.subr.mxu0 0.0
    %1518 = vmatpush1.msra.mxu0 0.0
    %1519 = vmatprep.subr.mxu0 0.0
    %1520 = vmatpush1.msra.mxu0 0.0
    %1521 = vmatprep.subr.mxu0 0.0
    %1522 = vmatpush1.msra.mxu0 0.0
    %1523 = vmatprep.subr.mxu0 0.0
    %1524 = vmatpush1.msra.mxu0 0.0
    %1525 = vmatprep.subr.mxu0 0.0
    %1526 = vmatpush1.msra.mxu0 0.0
    %1527 = vmatprep.subr.mxu0 0.0
    %1528 = vmatpush1.msra.mxu0 0.0
    %1529 = vmatprep.subr.mxu0 0.0
    %1530 = vmatpush1.msra.mxu0 0.0
    %1531 = vmatprep.subr.mxu0 0.0
    %1532 = vmatpush1.msra.mxu0 0.0
    %1533 = vmatprep.subr.mxu0 0.0
    %1534 = vmatpush1.msra.mxu0 0.0
    %1535 = vmatprep.subr.mxu0 0.0
    %1536 = vmatpush1.msra.mxu0 %v241
    %1537 = vmatprep.subr.mxu0 0.0
    %1538 = vmatpush1.msra.mxu0 %v240
    %1539 = vmatprep.subr.mxu0 0.0
    %1540 = vmatpush1.msra.mxu0 %v239
    %1541 = vmatprep.subr.mxu0 0.0
    %1542 = vmatpush1.msra.mxu0 %v238
    %1543 = vmatprep.subr.mxu0 0.0
    %1544 = vmatpush2.msra.mxu0 0.0
    %1545 = vmatprep.subr.mxu0 0.0
    %1546 = vmatpush2.msra.mxu0 0.0
    %1547 = vmatprep.subr.mxu0 0.0
    %1548 = vmatpush2.msra.mxu0 0.0
    %1549 = vmatprep.subr.mxu0 0.0
    %1550 = vmatpush2.msra.mxu0 0.0
    %1551 = vmatprep.subr.mxu0 0.0
    %1552 = vmatpush2.msra.mxu0 0.0
    %1553 = vmatprep.subr.mxu0 0.0
    %1554 = vmatpush2.msra.mxu0 0.0
    %1555 = vmatprep.subr.mxu0 0.0
    %1556 = vmatpush2.msra.mxu0 0.0
    %1557 = vmatprep.subr.mxu0 0.0
    %1558 = vmatpush2.msra.mxu0 0.0
    %1559 = vmatprep.subr.mxu0 0.0
    %1560 = vmatpush2.msra.mxu0 0.0
    %1561 = vmatprep.subr.mxu0 0.0
    %1562 = vmatpush2.msra.mxu0 0.0
    %1563 = vmatprep.subr.mxu0 0.0
    %1564 = vmatpush2.msra.mxu0 0.0
    %1565 = vmatprep.subr.mxu0 0.0
    %1566 = vmatpush2.msra.mxu0 0.0
    %1567 = vmatprep.subr.mxu0 0.0
    %1568 = vmatpush2.msra.mxu0 0.0
    %1569 = vmatprep.subr.mxu0 0.0
    %1570 = vmatpush2.msra.mxu0 0.0
    %1571 = vmatprep.subr.mxu0 0.0
    %1572 = vmatpush2.msra.mxu0 0.0
    %1573 = vmatprep.subr.mxu0 0.0
    %1574 = vmatpush2.msra.mxu0 0.0
    %1575 = vmatprep.mubr.f32.mxu0 0.0
    %1576 = vmatmul.mubr.f32.gmra.mxu0 %v1509
    %v1577 = vpop.f32.mrf.mxu0
    %v1578 = vadd.f32 %v242, %v1577
    %v1579 = vpop.f32.mrf.mxu0
    %1580 = vdwg.mxu0
    %v1582 = vrot.slane %v1468, 4
    %v1584 = vadd.f32 %v1578, %v1582
    %v1585 = vxor.u32 %v1584, 2147483648
    %v1586 = vmul.f32 %v1585, 1.442695
    %v1587 = vpow.pop %v1586
    %v1588 = vadd.f32 %v1587, 1.0
    %v1589 = vrcp.pop %v1588
    %v1590 = vmul.f32 1.0, %v1589
    %1591 = vrot.lane.b32.xlu0 %v1582, 64
    %v1592 = vpop.permute.xlu0 %1591
    %v1594 = vmul.f32 %v1590, %v1592
    %1596 = vrot.lane.b32.xlu0 %v1594, 64
    %v1597 = vpop.permute.xlu0 %1596
    %v1599 = vadd.f32 %v1578, %v1597
    %v1600 = vtanh.pop %v1599
    %v1602 = vrot.slane %v1600, 4
    %v1604 = vsub.f32 %v1393, %v1602
    %v1606 = vrot.slane %v1604, 4
    %1607 = vrot.lane.b32.xlu0 %v1606, 96
    %v1608 = vpop.permute.xlu0 %1607
    %v1610 = vmul.f32 %v1590, %v1608
    %1612 = vrot.lane.b32.xlu0 %v1610, 32
    %v1613 = vpop.permute.xlu0 %1612
    %v1615 = vadd.f32 %v1600, %v1613
    %1617 = vrot.lane.b32.xlu0 %v1615, 64
    %v1618 = vpop.permute.xlu0 %1617
    %1620 = vst.msk [vmem:[#allocation2 + $0x14] sm:$0xf] %vm480, %v1618
    %v1621 = vld [vmem:[#allocation2] sm:$0xff]
    %v1622 = vld [vmem:[#allocation2 + $0x8] sm:$0xff]
    %v1623 = vld [vmem:[#allocation2 + $0x10] sm:$0xff]
    %v1624 = vld [vmem:[%s3 + $0x18] sm:$0xff]
    %v1625 = vld [vmem:[%s3 + $0x50] sm:$0xff]
    %v1626 = vld [vmem:[%s3 + $0x88] sm:$0xff]
    %v1627 = vld [vmem:[%s3 + $0xc0] sm:$0xff]
    %v1629 = vsel %vm132, %v1621, 0
    %v1632 = vsel %vm132, %v1622, 0
    %v1635 = vsel %vm132, %v1623, 0
    %1637 = vmatprep.subr.mxu0 0.0
    %1638 = vmatpush1.msra.mxu0 0.0
    %1639 = vmatprep.subr.mxu0 0.0
    %1640 = vmatpush1.msra.mxu0 0.0
    %1641 = vmatprep.subr.mxu0 0.0
    %1642 = vmatpush1.msra.mxu0 0.0
    %1643 = vmatprep.subr.mxu0 0.0
    %1644 = vmatpush1.msra.mxu0 0.0
    %1645 = vmatprep.subr.mxu0 0.0
    %1646 = vmatpush1.msra.mxu0 0.0
    %1647 = vmatprep.subr.mxu0 0.0
    %1648 = vmatpush1.msra.mxu0 0.0
    %1649 = vmatprep.subr.mxu0 0.0
    %1650 = vmatpush1.msra.mxu0 0.0
    %1651 = vmatprep.subr.mxu0 0.0
    %1652 = vmatpush1.msra.mxu0 0.0
    %1653 = vmatprep.subr.mxu0 0.0
    %1654 = vmatpush1.msra.mxu0 0.0
    %1655 = vmatprep.subr.mxu0 0.0
    %1656 = vmatpush1.msra.mxu0 0.0
    %1657 = vmatprep.subr.mxu0 0.0
    %1658 = vmatpush1.msra.mxu0 0.0
    %1659 = vmatprep.subr.mxu0 0.0
    %1660 = vmatpush1.msra.mxu0 0.0
    %1661 = vmatprep.subr.mxu0 0.0
    %1662 = vmatpush1.msra.mxu0 %v1627
    %1663 = vmatprep.subr.mxu0 0.0
    %1664 = vmatpush1.msra.mxu0 %v1626
    %1665 = vmatprep.subr.mxu0 0.0
    %1666 = vmatpush1.msra.mxu0 %v1625
    %1667 = vmatprep.subr.mxu0 0.0
    %1668 = vmatpush1.msra.mxu0 %v1624
    %1669 = vmatprep.subr.mxu0 0.0
    %1670 = vmatpush2.msra.mxu0 0.0
    %1671 = vmatprep.subr.mxu0 0.0
    %1672 = vmatpush2.msra.mxu0 0.0
    %1673 = vmatprep.subr.mxu0 0.0
    %1674 = vmatpush2.msra.mxu0 0.0
    %1675 = vmatprep.subr.mxu0 0.0
    %1676 = vmatpush2.msra.mxu0 0.0
    %1677 = vmatprep.subr.mxu0 0.0
    %1678 = vmatpush2.msra.mxu0 0.0
    %1679 = vmatprep.subr.mxu0 0.0
    %1680 = vmatpush2.msra.mxu0 0.0
    %1681 = vmatprep.subr.mxu0 0.0
    %1682 = vmatpush2.msra.mxu0 0.0
    %1683 = vmatprep.subr.mxu0 0.0
    %1684 = vmatpush2.msra.mxu0 0.0
    %1685 = vmatprep.subr.mxu0 0.0
    %1686 = vmatpush2.msra.mxu0 0.0
    %1687 = vmatprep.subr.mxu0 0.0
    %1688 = vmatpush2.msra.mxu0 0.0
    %1689 = vmatprep.subr.mxu0 0.0
    %1690 = vmatpush2.msra.mxu0 0.0
    %1691 = vmatprep.subr.mxu0 0.0
    %1692 = vmatpush2.msra.mxu0 0.0
    %1693 = vmatprep.subr.mxu0 0.0
    %1694 = vmatpush2.msra.mxu0 0.0
    %1695 = vmatprep.subr.mxu0 0.0
    %1696 = vmatpush2.msra.mxu0 0.0
    %1697 = vmatprep.subr.mxu0 0.0
    %1698 = vmatpush2.msra.mxu0 0.0
    %1699 = vmatprep.subr.mxu0 0.0
    %1700 = vmatpush2.msra.mxu0 0.0
    %1701 = vmatprep.mubr.f32.mxu0 0.0
    %1702 = vmatmul.mubr.f32.gmra.mxu0 %v1629
    %v1703 = vpop.f32.mrf.mxu0
    %v1704 = vadd.f32 0.0, %v1703
    %v1705 = vpop.f32.mrf.mxu0
    %1706 = vmatprep.mubr.f32.mxu0 0.0
    %1707 = vmatmul.mubr.f32.gmra.mxu0 %v1632
    %v1708 = vpop.f32.mrf.mxu0
    %v1709 = vadd.f32 0.0, %v1708
    %v1710 = vpop.f32.mrf.mxu0
    %1711 = vmatprep.mubr.f32.mxu0 0.0
    %1712 = vmatmul.mubr.f32.gmra.mxu0 %v1635
    %v1713 = vpop.f32.mrf.mxu0
    %v1714 = vadd.f32 0.0, %v1713
    %v1715 = vpop.f32.mrf.mxu0
    %1716 = vdwg.mxu0
    %v1720 = vcombine.high %v1704, %v1704
    %v1722 = vunpack.c.l.s4 1966171168
    %v1723 = vunpack.c.0.s8 %v1722
    %v1724 = vlaneseq
    %v1725 = vshrl.u32 %v1724, 7
    %v1726 = vsub.s32 %v1723, %v1725
    %v1727 = vrot.slane %v1704, %v1726
    %v1729 = vunpack.c.l.s4 1966171168
    %v1730 = vunpack.c.0.s8 %v1729
    %v1731 = vlaneseq
    %v1732 = vshrl.u32 %v1731, 7
    %v1733 = vsub.s32 %v1730, %v1732
    %v1734 = vrot.slane %v1720, %v1733
    %v1735 = vcombine.high %v1727, %v1727
    %v1736 = vcombine.high %v1734, %v1734
    %v1738 = vunpack.c.l.s4 1966171168
    %v1739 = vunpack.c.0.s8 %v1738
    %v1740 = vlaneseq
    %v1741 = vshrl.u32 %v1740, 7
    %v1742 = vsub.s32 %v1739, %v1741
    %v1743 = vrot.slane %v1727, %v1742
    %v1745 = vunpack.c.l.s4 1966171168
    %v1746 = vunpack.c.0.s8 %v1745
    %v1747 = vlaneseq
    %v1748 = vshrl.u32 %v1747, 7
    %v1749 = vsub.s32 %v1746, %v1748
    %v1750 = vrot.slane %v1734, %v1749
    %v1752 = vunpack.c.l.s4 1966171168
    %v1753 = vunpack.c.0.s8 %v1752
    %v1754 = vlaneseq
    %v1755 = vshrl.u32 %v1754, 7
    %v1756 = vsub.s32 %v1753, %v1755
    %v1757 = vrot.slane %v1735, %v1756
    %v1759 = vunpack.c.l.s4 1966171168
    %v1760 = vunpack.c.0.s8 %v1759
    %v1761 = vlaneseq
    %v1762 = vshrl.u32 %v1761, 7
    %v1763 = vsub.s32 %v1760, %v1762
    %v1764 = vrot.slane %v1736, %v1763
    %v1765 = vcombine.high %v1743, %v1743
    %v1766 = vcombine.high %v1750, %v1750
    %v1767 = vcombine.high %v1757, %v1757
    %v1768 = vcombine.high %v1764, %v1764
    %v1769 = vcombine.high %v1709, %v1709
    %v1771 = vunpack.c.l.s4 1966171168
    %v1772 = vunpack.c.0.s8 %v1771
    %v1773 = vlaneseq
    %v1774 = vshrl.u32 %v1773, 7
    %v1775 = vsub.s32 %v1772, %v1774
    %v1776 = vrot.slane %v1709, %v1775
    %v1778 = vunpack.c.l.s4 1966171168
    %v1779 = vunpack.c.0.s8 %v1778
    %v1780 = vlaneseq
    %v1781 = vshrl.u32 %v1780, 7
    %v1782 = vsub.s32 %v1779, %v1781
    %v1783 = vrot.slane %v1769, %v1782
    %v1784 = vcombine.high %v1776, %v1776
    %v1785 = vcombine.high %v1783, %v1783
    %v1787 = vunpack.c.l.s4 1966171168
    %v1788 = vunpack.c.0.s8 %v1787
    %v1789 = vlaneseq
    %v1790 = vshrl.u32 %v1789, 7
    %v1791 = vsub.s32 %v1788, %v1790
    %v1792 = vrot.slane %v1776, %v1791
    %v1794 = vunpack.c.l.s4 1966171168
    %v1795 = vunpack.c.0.s8 %v1794
    %v1796 = vlaneseq
    %v1797 = vshrl.u32 %v1796, 7
    %v1798 = vsub.s32 %v1795, %v1797
    %v1799 = vrot.slane %v1783, %v1798
    %v1801 = vunpack.c.l.s4 1966171168
    %v1802 = vunpack.c.0.s8 %v1801
    %v1803 = vlaneseq
    %v1804 = vshrl.u32 %v1803, 7
    %v1805 = vsub.s32 %v1802, %v1804
    %v1806 = vrot.slane %v1784, %v1805
    %v1808 = vunpack.c.l.s4 1966171168
    %v1809 = vunpack.c.0.s8 %v1808
    %v1810 = vlaneseq
    %v1811 = vshrl.u32 %v1810, 7
    %v1812 = vsub.s32 %v1809, %v1811
    %v1813 = vrot.slane %v1785, %v1812
    %v1814 = vcombine.high %v1792, %v1792
    %v1815 = vcombine.high %v1799, %v1799
    %v1816 = vcombine.high %v1806, %v1806
    %v1817 = vcombine.high %v1813, %v1813
    %v1818 = vcombine.high %v1714, %v1714
    %v1820 = vunpack.c.l.s4 1966171168
    %v1821 = vunpack.c.0.s8 %v1820
    %v1822 = vlaneseq
    %v1823 = vshrl.u32 %v1822, 7
    %v1824 = vsub.s32 %v1821, %v1823
    %v1825 = vrot.slane %v1714, %v1824
    %v1827 = vunpack.c.l.s4 1966171168
    %v1828 = vunpack.c.0.s8 %v1827
    %v1829 = vlaneseq
    %v1830 = vshrl.u32 %v1829, 7
    %v1831 = vsub.s32 %v1828, %v1830
    %v1832 = vrot.slane %v1818, %v1831
    %v1833 = vcombine.high %v1825, %v1825
    %v1834 = vcombine.high %v1832, %v1832
    %v1836 = vunpack.c.l.s4 1966171168
    %v1837 = vunpack.c.0.s8 %v1836
    %v1838 = vlaneseq
    %v1839 = vshrl.u32 %v1838, 7
    %v1840 = vsub.s32 %v1837, %v1839
    %v1841 = vrot.slane %v1825, %v1840
    %v1843 = vunpack.c.l.s4 1966171168
    %v1844 = vunpack.c.0.s8 %v1843
    %v1845 = vlaneseq
    %v1846 = vshrl.u32 %v1845, 7
    %v1847 = vsub.s32 %v1844, %v1846
    %v1848 = vrot.slane %v1832, %v1847
    %v1850 = vunpack.c.l.s4 1966171168
    %v1851 = vunpack.c.0.s8 %v1850
    %v1852 = vlaneseq
    %v1853 = vshrl.u32 %v1852, 7
    %v1854 = vsub.s32 %v1851, %v1853
    %v1855 = vrot.slane %v1833, %v1854
    %v1857 = vunpack.c.l.s4 1966171168
    %v1858 = vunpack.c.0.s8 %v1857
    %v1859 = vlaneseq
    %v1860 = vshrl.u32 %v1859, 7
    %v1861 = vsub.s32 %v1858, %v1860
    %v1862 = vrot.slane %v1834, %v1861
    %v1863 = vcombine.high %v1841, %v1841
    %v1864 = vcombine.high %v1848, %v1848
    %v1865 = vcombine.high %v1855, %v1855
    %v1866 = vcombine.high %v1862, %v1862
    %v1867 = vlaneseq
    %v1868 = vshrl.u32 %v1867, 7
    %v1869 = vsub.s32 0, %v1868
    %v1870 = vrot.slane %v1743, %v1869
    %v1871 = vlaneseq
    %v1872 = vshrl.u32 %v1871, 7
    %v1873 = vsub.s32 0, %v1872
    %v1874 = vrot.slane %v1757, %v1873
    %v1875 = vlaneseq
    %v1876 = vshrl.u32 %v1875, 7
    %v1877 = vsub.s32 0, %v1876
    %v1878 = vrot.slane %v1765, %v1877
    %v1879 = vlaneseq
    %v1880 = vshrl.u32 %v1879, 7
    %v1881 = vsub.s32 0, %v1880
    %v1882 = vrot.slane %v1767, %v1881
    %v1883 = vlaneseq
    %v1884 = vshrl.u32 %v1883, 7
    %v1885 = vsub.s32 0, %v1884
    %v1886 = vrot.slane %v1750, %v1885
    %v1887 = vlaneseq
    %v1888 = vshrl.u32 %v1887, 7
    %v1889 = vsub.s32 0, %v1888
    %v1890 = vrot.slane %v1764, %v1889
    %v1891 = vlaneseq
    %v1892 = vshrl.u32 %v1891, 7
    %v1893 = vsub.s32 0, %v1892
    %v1894 = vrot.slane %v1766, %v1893
    %v1895 = vlaneseq
    %v1896 = vshrl.u32 %v1895, 7
    %v1897 = vsub.s32 0, %v1896
    %v1898 = vrot.slane %v1768, %v1897
    %v1899 = vlaneseq
    %v1900 = vshrl.u32 %v1899, 7
    %v1901 = vsub.s32 0, %v1900
    %v1902 = vrot.slane %v1792, %v1901
    %v1903 = vlaneseq
    %v1904 = vshrl.u32 %v1903, 7
    %v1905 = vsub.s32 0, %v1904
    %v1906 = vrot.slane %v1806, %v1905
    %v1907 = vlaneseq
    %v1908 = vshrl.u32 %v1907, 7
    %v1909 = vsub.s32 0, %v1908
    %v1910 = vrot.slane %v1814, %v1909
    %v1911 = vlaneseq
    %v1912 = vshrl.u32 %v1911, 7
    %v1913 = vsub.s32 0, %v1912
    %v1914 = vrot.slane %v1816, %v1913
    %v1915 = vlaneseq
    %v1916 = vshrl.u32 %v1915, 7
    %v1917 = vsub.s32 0, %v1916
    %v1918 = vrot.slane %v1799, %v1917
    %v1919 = vlaneseq
    %v1920 = vshrl.u32 %v1919, 7
    %v1921 = vsub.s32 0, %v1920
    %v1922 = vrot.slane %v1813, %v1921
    %v1923 = vlaneseq
    %v1924 = vshrl.u32 %v1923, 7
    %v1925 = vsub.s32 0, %v1924
    %v1926 = vrot.slane %v1815, %v1925
    %v1927 = vlaneseq
    %v1928 = vshrl.u32 %v1927, 7
    %v1929 = vsub.s32 0, %v1928
    %v1930 = vrot.slane %v1817, %v1929
    %v1931 = vlaneseq
    %v1932 = vshrl.u32 %v1931, 7
    %v1933 = vsub.s32 0, %v1932
    %v1934 = vrot.slane %v1841, %v1933
    %v1935 = vlaneseq
    %v1936 = vshrl.u32 %v1935, 7
    %v1937 = vsub.s32 0, %v1936
    %v1938 = vrot.slane %v1855, %v1937
    %v1939 = vlaneseq
    %v1940 = vshrl.u32 %v1939, 7
    %v1941 = vsub.s32 0, %v1940
    %v1942 = vrot.slane %v1863, %v1941
    %v1943 = vlaneseq
    %v1944 = vshrl.u32 %v1943, 7
    %v1945 = vsub.s32 0, %v1944
    %v1946 = vrot.slane %v1865, %v1945
    %v1947 = vlaneseq
    %v1948 = vshrl.u32 %v1947, 7
    %v1949 = vsub.s32 0, %v1948
    %v1950 = vrot.slane %v1848, %v1949
    %v1951 = vlaneseq
    %v1952 = vshrl.u32 %v1951, 7
    %v1953 = vsub.s32 0, %v1952
    %v1954 = vrot.slane %v1862, %v1953
    %v1955 = vlaneseq
    %v1956 = vshrl.u32 %v1955, 7
    %v1957 = vsub.s32 0, %v1956
    %v1958 = vrot.slane %v1864, %v1957
    %v1959 = vlaneseq
    %v1960 = vshrl.u32 %v1959, 7
    %v1961 = vsub.s32 0, %v1960
    %v1962 = vrot.slane %v1866, %v1961
    %v1987 = vadd.f32 %v1870, %v212
    %v1988 = vadd.f32 %v1874, %v217
    %v1989 = vadd.f32 %v1878, %v222
    %v1990 = vadd.f32 %v1882, %v227
    %v1991 = vadd.f32 %v1886, %v212
    %v1992 = vadd.f32 %v1890, %v217
    %v1993 = vadd.f32 %v1894, %v222
    %v1994 = vadd.f32 %v1898, %v227
    %v1995 = vadd.f32 %v1902, %v212
    %v1996 = vadd.f32 %v1906, %v217
    %v1997 = vadd.f32 %v1910, %v222
    %v1998 = vadd.f32 %v1914, %v227
    %v1999 = vadd.f32 %v1918, %v212
    %v2000 = vadd.f32 %v1922, %v217
    %v2001 = vadd.f32 %v1926, %v222
    %v2002 = vadd.f32 %v1930, %v227
    %v2003 = vadd.f32 %v1934, %v212
    %v2004 = vadd.f32 %v1938, %v217
    %v2005 = vadd.f32 %v1942, %v222
    %v2006 = vadd.f32 %v1946, %v227
    %v2007 = vadd.f32 %v1950, %v212
    %v2008 = vadd.f32 %v1954, %v217
    %v2009 = vadd.f32 %v1958, %v222
    %v2010 = vadd.f32 %v1962, %v227
    %v2011 = vxor.u32 %v1987, 2147483648
    %v2012 = vxor.u32 %v1988, 2147483648
    %v2013 = vxor.u32 %v1989, 2147483648
    %v2014 = vxor.u32 %v1990, 2147483648
    %v2015 = vxor.u32 %v1991, 2147483648
    %v2016 = vxor.u32 %v1992, 2147483648
    %v2017 = vxor.u32 %v1993, 2147483648
    %v2018 = vxor.u32 %v1994, 2147483648
    %v2019 = vxor.u32 %v1995, 2147483648
    %v2020 = vxor.u32 %v1996, 2147483648
    %v2021 = vxor.u32 %v1997, 2147483648
    %v2022 = vxor.u32 %v1998, 2147483648
    %v2023 = vxor.u32 %v1999, 2147483648
    %v2024 = vxor.u32 %v2000, 2147483648
    %v2025 = vxor.u32 %v2001, 2147483648
    %v2026 = vxor.u32 %v2002, 2147483648
    %v2027 = vxor.u32 %v2003, 2147483648
    %v2028 = vxor.u32 %v2004, 2147483648
    %v2029 = vxor.u32 %v2005, 2147483648
    %v2030 = vxor.u32 %v2006, 2147483648
    %v2031 = vxor.u32 %v2007, 2147483648
    %v2032 = vxor.u32 %v2008, 2147483648
    %v2033 = vxor.u32 %v2009, 2147483648
    %v2034 = vxor.u32 %v2010, 2147483648
    %v2035 = vmul.f32 %v2011, 1.442695
    %v2036 = vpow.pop %v2035
    %v2037 = vmul.f32 %v2012, 1.442695
    %v2038 = vpow.pop %v2037
    %v2039 = vmul.f32 %v2013, 1.442695
    %v2040 = vpow.pop %v2039
    %v2041 = vmul.f32 %v2014, 1.442695
    %v2042 = vpow.pop %v2041
    %v2043 = vmul.f32 %v2015, 1.442695
    %v2044 = vpow.pop %v2043
    %v2045 = vmul.f32 %v2016, 1.442695
    %v2046 = vpow.pop %v2045
    %v2047 = vmul.f32 %v2017, 1.442695
    %v2048 = vpow.pop %v2047
    %v2049 = vmul.f32 %v2018, 1.442695
    %v2050 = vpow.pop %v2049
    %v2051 = vmul.f32 %v2019, 1.442695
    %v2052 = vpow.pop %v2051
    %v2053 = vmul.f32 %v2020, 1.442695
    %v2054 = vpow.pop %v2053
    %v2055 = vmul.f32 %v2021, 1.442695
    %v2056 = vpow.pop %v2055
    %v2057 = vmul.f32 %v2022, 1.442695
    %v2058 = vpow.pop %v2057
    %v2059 = vmul.f32 %v2023, 1.442695
    %v2060 = vpow.pop %v2059
    %v2061 = vmul.f32 %v2024, 1.442695
    %v2062 = vpow.pop %v2061
    %v2063 = vmul.f32 %v2025, 1.442695
    %v2064 = vpow.pop %v2063
    %v2065 = vmul.f32 %v2026, 1.442695
    %v2066 = vpow.pop %v2065
    %v2067 = vmul.f32 %v2027, 1.442695
    %v2068 = vpow.pop %v2067
    %v2069 = vmul.f32 %v2028, 1.442695
    %v2070 = vpow.pop %v2069
    %v2071 = vmul.f32 %v2029, 1.442695
    %v2072 = vpow.pop %v2071
    %v2073 = vmul.f32 %v2030, 1.442695
    %v2074 = vpow.pop %v2073
    %v2075 = vmul.f32 %v2031, 1.442695
    %v2076 = vpow.pop %v2075
    %v2077 = vmul.f32 %v2032, 1.442695
    %v2078 = vpow.pop %v2077
    %v2079 = vmul.f32 %v2033, 1.442695
    %v2080 = vpow.pop %v2079
    %v2081 = vmul.f32 %v2034, 1.442695
    %v2082 = vpow.pop %v2081
    %v2083 = vadd.f32 %v2036, 1.0
    %v2084 = vadd.f32 %v2038, 1.0
    %v2085 = vadd.f32 %v2040, 1.0
    %v2086 = vadd.f32 %v2042, 1.0
    %v2087 = vadd.f32 %v2044, 1.0
    %v2088 = vadd.f32 %v2046, 1.0
    %v2089 = vadd.f32 %v2048, 1.0
    %v2090 = vadd.f32 %v2050, 1.0
    %v2091 = vadd.f32 %v2052, 1.0
    %v2092 = vadd.f32 %v2054, 1.0
    %v2093 = vadd.f32 %v2056, 1.0
    %v2094 = vadd.f32 %v2058, 1.0
    %v2095 = vadd.f32 %v2060, 1.0
    %v2096 = vadd.f32 %v2062, 1.0
    %v2097 = vadd.f32 %v2064, 1.0
    %v2098 = vadd.f32 %v2066, 1.0
    %v2099 = vadd.f32 %v2068, 1.0
    %v2100 = vadd.f32 %v2070, 1.0
    %v2101 = vadd.f32 %v2072, 1.0
    %v2102 = vadd.f32 %v2074, 1.0
    %v2103 = vadd.f32 %v2076, 1.0
    %v2104 = vadd.f32 %v2078, 1.0
    %v2105 = vadd.f32 %v2080, 1.0
    %v2106 = vadd.f32 %v2082, 1.0
    %v2107 = vrcp.pop %v2083
    %v2108 = vmul.f32 1.0, %v2107
    %v2109 = vrcp.pop %v2084
    %v2110 = vmul.f32 1.0, %v2109
    %v2111 = vrcp.pop %v2085
    %v2112 = vmul.f32 1.0, %v2111
    %v2113 = vrcp.pop %v2086
    %v2114 = vmul.f32 1.0, %v2113
    %v2115 = vrcp.pop %v2087
    %v2116 = vmul.f32 1.0, %v2115
    %v2117 = vrcp.pop %v2088
    %v2118 = vmul.f32 1.0, %v2117
    %v2119 = vrcp.pop %v2089
    %v2120 = vmul.f32 1.0, %v2119
    %v2121 = vrcp.pop %v2090
    %v2122 = vmul.f32 1.0, %v2121
    %v2123 = vrcp.pop %v2091
    %v2124 = vmul.f32 1.0, %v2123
    %v2125 = vrcp.pop %v2092
    %v2126 = vmul.f32 1.0, %v2125
    %v2127 = vrcp.pop %v2093
    %v2128 = vmul.f32 1.0, %v2127
    %v2129 = vrcp.pop %v2094
    %v2130 = vmul.f32 1.0, %v2129
    %v2131 = vrcp.pop %v2095
    %v2132 = vmul.f32 1.0, %v2131
    %v2133 = vrcp.pop %v2096
    %v2134 = vmul.f32 1.0, %v2133
    %v2135 = vrcp.pop %v2097
    %v2136 = vmul.f32 1.0, %v2135
    %v2137 = vrcp.pop %v2098
    %v2138 = vmul.f32 1.0, %v2137
    %v2139 = vrcp.pop %v2099
    %v2140 = vmul.f32 1.0, %v2139
    %v2141 = vrcp.pop %v2100
    %v2142 = vmul.f32 1.0, %v2141
    %v2143 = vrcp.pop %v2101
    %v2144 = vmul.f32 1.0, %v2143
    %v2145 = vrcp.pop %v2102
    %v2146 = vmul.f32 1.0, %v2145
    %v2147 = vrcp.pop %v2103
    %v2148 = vmul.f32 1.0, %v2147
    %v2149 = vrcp.pop %v2104
    %v2150 = vmul.f32 1.0, %v2149
    %v2151 = vrcp.pop %v2105
    %v2152 = vmul.f32 1.0, %v2151
    %v2153 = vrcp.pop %v2106
    %v2154 = vmul.f32 1.0, %v2153
    %v2155 = vmul.f32 %v2108, %v27
    %v2156 = vmul.f32 %v2110, %v28
    %v2157 = vmul.f32 %v2112, %v29
    %v2158 = vmul.f32 %v2114, %v30
    %v2159 = vmul.f32 %v2116, %v27
    %v2160 = vmul.f32 %v2118, %v28
    %v2161 = vmul.f32 %v2120, %v29
    %v2162 = vmul.f32 %v2122, %v30
    %v2163 = vmul.f32 %v2124, %v27
    %v2164 = vmul.f32 %v2126, %v28
    %v2165 = vmul.f32 %v2128, %v29
    %v2166 = vmul.f32 %v2130, %v30
    %v2167 = vmul.f32 %v2132, %v27
    %v2168 = vmul.f32 %v2134, %v28
    %v2169 = vmul.f32 %v2136, %v29
    %v2170 = vmul.f32 %v2138, %v30
    %v2171 = vmul.f32 %v2140, %v27
    %v2172 = vmul.f32 %v2142, %v28
    %v2173 = vmul.f32 %v2144, %v29
    %v2174 = vmul.f32 %v2146, %v30
    %v2175 = vmul.f32 %v2148, %v27
    %v2176 = vmul.f32 %v2150, %v28
    %v2177 = vmul.f32 %v2152, %v29
    %v2178 = vmul.f32 %v2154, %v30
    %v2179 = vsel %vm132, %v2155, 0.0
    %v2180 = vrot.slane %v2179, 4
    %v2181 = vadd.f32 %v2179, %v2180
    %v2182 = vrot.slane %v2181, 2
    %v2183 = vadd.f32 %v2181, %v2182
    %v2184 = vrot.slane %v2183, 1
    %v2185 = vadd.f32 %v2183, %v2184
    %v2186 = vsel %vm132, %v2156, 0.0
    %v2187 = vrot.slane %v2186, 4
    %v2188 = vadd.f32 %v2186, %v2187
    %v2189 = vrot.slane %v2188, 2
    %v2190 = vadd.f32 %v2188, %v2189
    %v2191 = vrot.slane %v2190, 1
    %v2192 = vadd.f32 %v2190, %v2191
    %v2193 = vsel %vm132, %v2157, 0.0
    %v2194 = vrot.slane %v2193, 4
    %v2195 = vadd.f32 %v2193, %v2194
    %v2196 = vrot.slane %v2195, 2
    %v2197 = vadd.f32 %v2195, %v2196
    %v2198 = vrot.slane %v2197, 1
    %v2199 = vadd.f32 %v2197, %v2198
    %v2200 = vsel %vm132, %v2158, 0.0
    %v2201 = vrot.slane %v2200, 4
    %v2202 = vadd.f32 %v2200, %v2201
    %v2203 = vrot.slane %v2202, 2
    %v2204 = vadd.f32 %v2202, %v2203
    %v2205 = vrot.slane %v2204, 1
    %v2206 = vadd.f32 %v2204, %v2205
    %v2207 = vsel %vm132, %v2159, 0.0
    %v2208 = vrot.slane %v2207, 4
    %v2209 = vadd.f32 %v2207, %v2208
    %v2210 = vrot.slane %v2209, 2
    %v2211 = vadd.f32 %v2209, %v2210
    %v2212 = vrot.slane %v2211, 1
    %v2213 = vadd.f32 %v2211, %v2212
    %v2214 = vsel %vm132, %v2160, 0.0
    %v2215 = vrot.slane %v2214, 4
    %v2216 = vadd.f32 %v2214, %v2215
    %v2217 = vrot.slane %v2216, 2
    %v2218 = vadd.f32 %v2216, %v2217
    %v2219 = vrot.slane %v2218, 1
    %v2220 = vadd.f32 %v2218, %v2219
    %v2221 = vsel %vm132, %v2161, 0.0
    %v2222 = vrot.slane %v2221, 4
    %v2223 = vadd.f32 %v2221, %v2222
    %v2224 = vrot.slane %v2223, 2
    %v2225 = vadd.f32 %v2223, %v2224
    %v2226 = vrot.slane %v2225, 1
    %v2227 = vadd.f32 %v2225, %v2226
    %v2228 = vsel %vm132, %v2162, 0.0
    %v2229 = vrot.slane %v2228, 4
    %v2230 = vadd.f32 %v2228, %v2229
    %v2231 = vrot.slane %v2230, 2
    %v2232 = vadd.f32 %v2230, %v2231
    %v2233 = vrot.slane %v2232, 1
    %v2234 = vadd.f32 %v2232, %v2233
    %v2235 = vsel %vm132, %v2163, 0.0
    %v2236 = vrot.slane %v2235, 4
    %v2237 = vadd.f32 %v2235, %v2236
    %v2238 = vrot.slane %v2237, 2
    %v2239 = vadd.f32 %v2237, %v2238
    %v2240 = vrot.slane %v2239, 1
    %v2241 = vadd.f32 %v2239, %v2240
    %v2242 = vsel %vm132, %v2164, 0.0
    %v2243 = vrot.slane %v2242, 4
    %v2244 = vadd.f32 %v2242, %v2243
    %v2245 = vrot.slane %v2244, 2
    %v2246 = vadd.f32 %v2244, %v2245
    %v2247 = vrot.slane %v2246, 1
    %v2248 = vadd.f32 %v2246, %v2247
    %v2249 = vsel %vm132, %v2165, 0.0
    %v2250 = vrot.slane %v2249, 4
    %v2251 = vadd.f32 %v2249, %v2250
    %v2252 = vrot.slane %v2251, 2
    %v2253 = vadd.f32 %v2251, %v2252
    %v2254 = vrot.slane %v2253, 1
    %v2255 = vadd.f32 %v2253, %v2254
    %v2256 = vsel %vm132, %v2166, 0.0
    %v2257 = vrot.slane %v2256, 4
    %v2258 = vadd.f32 %v2256, %v2257
    %v2259 = vrot.slane %v2258, 2
    %v2260 = vadd.f32 %v2258, %v2259
    %v2261 = vrot.slane %v2260, 1
    %v2262 = vadd.f32 %v2260, %v2261
    %v2263 = vsel %vm132, %v2167, 0.0
    %v2264 = vrot.slane %v2263, 4
    %v2265 = vadd.f32 %v2263, %v2264
    %v2266 = vrot.slane %v2265, 2
    %v2267 = vadd.f32 %v2265, %v2266
    %v2268 = vrot.slane %v2267, 1
    %v2269 = vadd.f32 %v2267, %v2268
    %v2270 = vsel %vm132, %v2168, 0.0
    %v2271 = vrot.slane %v2270, 4
    %v2272 = vadd.f32 %v2270, %v2271
    %v2273 = vrot.slane %v2272, 2
    %v2274 = vadd.f32 %v2272, %v2273
    %v2275 = vrot.slane %v2274, 1
    %v2276 = vadd.f32 %v2274, %v2275
    %v2277 = vsel %vm132, %v2169, 0.0
    %v2278 = vrot.slane %v2277, 4
    %v2279 = vadd.f32 %v2277, %v2278
    %v2280 = vrot.slane %v2279, 2
    %v2281 = vadd.f32 %v2279, %v2280
    %v2282 = vrot.slane %v2281, 1
    %v2283 = vadd.f32 %v2281, %v2282
    %v2284 = vsel %vm132, %v2170, 0.0
    %v2285 = vrot.slane %v2284, 4
    %v2286 = vadd.f32 %v2284, %v2285
    %v2287 = vrot.slane %v2286, 2
    %v2288 = vadd.f32 %v2286, %v2287
    %v2289 = vrot.slane %v2288, 1
    %v2290 = vadd.f32 %v2288, %v2289
    %v2291 = vsel %vm132, %v2171, 0.0
    %v2292 = vrot.slane %v2291, 4
    %v2293 = vadd.f32 %v2291, %v2292
    %v2294 = vrot.slane %v2293, 2
    %v2295 = vadd.f32 %v2293, %v2294
    %v2296 = vrot.slane %v2295, 1
    %v2297 = vadd.f32 %v2295, %v2296
    %v2298 = vsel %vm132, %v2172, 0.0
    %v2299 = vrot.slane %v2298, 4
    %v2300 = vadd.f32 %v2298, %v2299
    %v2301 = vrot.slane %v2300, 2
    %v2302 = vadd.f32 %v2300, %v2301
    %v2303 = vrot.slane %v2302, 1
    %v2304 = vadd.f32 %v2302, %v2303
    %v2305 = vsel %vm132, %v2173, 0.0
    %v2306 = vrot.slane %v2305, 4
    %v2307 = vadd.f32 %v2305, %v2306
    %v2308 = vrot.slane %v2307, 2
    %v2309 = vadd.f32 %v2307, %v2308
    %v2310 = vrot.slane %v2309, 1
    %v2311 = vadd.f32 %v2309, %v2310
    %v2312 = vsel %vm132, %v2174, 0.0
    %v2313 = vrot.slane %v2312, 4
    %v2314 = vadd.f32 %v2312, %v2313
    %v2315 = vrot.slane %v2314, 2
    %v2316 = vadd.f32 %v2314, %v2315
    %v2317 = vrot.slane %v2316, 1
    %v2318 = vadd.f32 %v2316, %v2317
    %v2319 = vsel %vm132, %v2175, 0.0
    %v2320 = vrot.slane %v2319, 4
    %v2321 = vadd.f32 %v2319, %v2320
    %v2322 = vrot.slane %v2321, 2
    %v2323 = vadd.f32 %v2321, %v2322
    %v2324 = vrot.slane %v2323, 1
    %v2325 = vadd.f32 %v2323, %v2324
    %v2326 = vsel %vm132, %v2176, 0.0
    %v2327 = vrot.slane %v2326, 4
    %v2328 = vadd.f32 %v2326, %v2327
    %v2329 = vrot.slane %v2328, 2
    %v2330 = vadd.f32 %v2328, %v2329
    %v2331 = vrot.slane %v2330, 1
    %v2332 = vadd.f32 %v2330, %v2331
    %v2333 = vsel %vm132, %v2177, 0.0
    %v2334 = vrot.slane %v2333, 4
    %v2335 = vadd.f32 %v2333, %v2334
    %v2336 = vrot.slane %v2335, 2
    %v2337 = vadd.f32 %v2335, %v2336
    %v2338 = vrot.slane %v2337, 1
    %v2339 = vadd.f32 %v2337, %v2338
    %v2340 = vsel %vm132, %v2178, 0.0
    %v2341 = vrot.slane %v2340, 4
    %v2342 = vadd.f32 %v2340, %v2341
    %v2343 = vrot.slane %v2342, 2
    %v2344 = vadd.f32 %v2342, %v2343
    %v2345 = vrot.slane %v2344, 1
    %v2346 = vadd.f32 %v2344, %v2345
    %2350 = vrot.lane.b32.xlu0 %v110, 64
    %v2351 = vpop.permute.xlu0 %2350
    %2352 = vrot.lane.b32.xlu0 %v115, 64
    %v2353 = vpop.permute.xlu0 %2352
    %2354 = vrot.lane.b32.xlu0 %v120, 64
    %v2355 = vpop.permute.xlu0 %2354
    %v2359 = vadd.f32 %v1704, %v2351
    %v2360 = vadd.f32 %v1709, %v2353
    %v2361 = vadd.f32 %v1714, %v2355
    %v2362 = vld [vmem:[%s5 + $0x4] ss:$0 sm:$0xff]
    %2364 = vrot.lane.b32.xlu0 %v2362, 32
    %v2365 = vpop.permute.xlu0 %2364
    %v2367 = vadd.f32 %v2359, %v2365
    %v2368 = vadd.f32 %v2360, %v2365
    %v2369 = vadd.f32 %v2361, %v2365
    %v2370 = vld [vmem:[%s3 + $0x28] sm:$0xff]
    %v2371 = vld [vmem:[%s3 + $0x60] sm:$0xff]
    %v2372 = vld [vmem:[%s3 + $0x98] sm:$0xff]
    %v2373 = vld [vmem:[%s3 + $0xd0] sm:$0xff]
    %vm2398 = vcmask 1041409
    %v2399 = vsel %vm2398, %v2192, %v2185
    %vm2400 = vcmask 1042434
    %v2401 = vsel %vm2400, %v2199, %v2399
    %vm2402 = vcmask 1043459
    %v2403 = vsel %vm2402, %v2206, %v2401
    %vm2404 = vcmask 1044484
    %v2405 = vsel %vm2404, %v2213, %v2403
    %vm2406 = vcmask 1045509
    %v2407 = vsel %vm2406, %v2220, %v2405
    %vm2408 = vcmask 1046534
    %v2409 = vsel %vm2408, %v2227, %v2407
    %vm2410 = vcmask 1047559
    %v2411 = vsel %vm2410, %v2234, %v2409
    %v2412 = vsel %vm2398, %v2248, %v2241
    %v2413 = vsel %vm2400, %v2255, %v2412
    %v2414 = vsel %vm2402, %v2262, %v2413
    %v2415 = vsel %vm2404, %v2269, %v2414
    %v2416 = vsel %vm2406, %v2276, %v2415
    %v2417 = vsel %vm2408, %v2283, %v2416
    %v2418 = vsel %vm2410, %v2290, %v2417
    %v2419 = vsel %vm2398, %v2304, %v2297
    %v2420 = vsel %vm2400, %v2311, %v2419
    %v2421 = vsel %vm2402, %v2318, %v2420
    %v2422 = vsel %vm2404, %v2325, %v2421
    %v2423 = vsel %vm2406, %v2332, %v2422
    %v2424 = vsel %vm2408, %v2339, %v2423
    %v2425 = vsel %vm2410, %v2346, %v2424
    %v2426 = vsel %vm132, %v2411, 0
    %v2428 = vsel %vm132, %v2418, 0
    %v2430 = vsel %vm132, %v2425, 0
    %2432 = vmatprep.subr.mxu0 0.0
    %2433 = vmatpush1.msra.mxu0 0.0
    %2434 = vmatprep.subr.mxu0 0.0
    %2435 = vmatpush1.msra.mxu0 0.0
    %2436 = vmatprep.subr.mxu0 0.0
    %2437 = vmatpush1.msra.mxu0 0.0
    %2438 = vmatprep.subr.mxu0 0.0
    %2439 = vmatpush1.msra.mxu0 0.0
    %2440 = vmatprep.subr.mxu0 0.0
    %2441 = vmatpush1.msra.mxu0 0.0
    %2442 = vmatprep.subr.mxu0 0.0
    %2443 = vmatpush1.msra.mxu0 0.0
    %2444 = vmatprep.subr.mxu0 0.0
    %2445 = vmatpush1.msra.mxu0 0.0
    %2446 = vmatprep.subr.mxu0 0.0
    %2447 = vmatpush1.msra.mxu0 0.0
    %2448 = vmatprep.subr.mxu0 0.0
    %2449 = vmatpush1.msra.mxu0 0.0
    %2450 = vmatprep.subr.mxu0 0.0
    %2451 = vmatpush1.msra.mxu0 0.0
    %2452 = vmatprep.subr.mxu0 0.0
    %2453 = vmatpush1.msra.mxu0 0.0
    %2454 = vmatprep.subr.mxu0 0.0
    %2455 = vmatpush1.msra.mxu0 0.0
    %2456 = vmatprep.subr.mxu0 0.0
    %2457 = vmatpush1.msra.mxu0 %v2373
    %2458 = vmatprep.subr.mxu0 0.0
    %2459 = vmatpush1.msra.mxu0 %v2372
    %2460 = vmatprep.subr.mxu0 0.0
    %2461 = vmatpush1.msra.mxu0 %v2371
    %2462 = vmatprep.subr.mxu0 0.0
    %2463 = vmatpush1.msra.mxu0 %v2370
    %2464 = vmatprep.subr.mxu0 0.0
    %2465 = vmatpush2.msra.mxu0 0.0
    %2466 = vmatprep.subr.mxu0 0.0
    %2467 = vmatpush2.msra.mxu0 0.0
    %2468 = vmatprep.subr.mxu0 0.0
    %2469 = vmatpush2.msra.mxu0 0.0
    %2470 = vmatprep.subr.mxu0 0.0
    %2471 = vmatpush2.msra.mxu0 0.0
    %2472 = vmatprep.subr.mxu0 0.0
    %2473 = vmatpush2.msra.mxu0 0.0
    %2474 = vmatprep.subr.mxu0 0.0
    %2475 = vmatpush2.msra.mxu0 0.0
    %2476 = vmatprep.subr.mxu0 0.0
    %2477 = vmatpush2.msra.mxu0 0.0
    %2478 = vmatprep.subr.mxu0 0.0
    %2479 = vmatpush2.msra.mxu0 0.0
    %2480 = vmatprep.subr.mxu0 0.0
    %2481 = vmatpush2.msra.mxu0 0.0
    %2482 = vmatprep.subr.mxu0 0.0
    %2483 = vmatpush2.msra.mxu0 0.0
    %2484 = vmatprep.subr.mxu0 0.0
    %2485 = vmatpush2.msra.mxu0 0.0
    %2486 = vmatprep.subr.mxu0 0.0
    %2487 = vmatpush2.msra.mxu0 0.0
    %2488 = vmatprep.subr.mxu0 0.0
    %2489 = vmatpush2.msra.mxu0 0.0
    %2490 = vmatprep.subr.mxu0 0.0
    %2491 = vmatpush2.msra.mxu0 0.0
    %2492 = vmatprep.subr.mxu0 0.0
    %2493 = vmatpush2.msra.mxu0 0.0
    %2494 = vmatprep.subr.mxu0 0.0
    %2495 = vmatpush2.msra.mxu0 0.0
    %2496 = vmatprep.mubr.f32.mxu0 0.0
    %2497 = vmatmul.mubr.f32.gmra.mxu0 %v2426
    %v2498 = vpop.f32.mrf.mxu0
    %v2499 = vadd.f32 0.0, %v2498
    %v2500 = vpop.f32.mrf.mxu0
    %2501 = vmatprep.mubr.f32.mxu0 0.0
    %2502 = vmatmul.mubr.f32.gmra.mxu0 %v2428
    %v2503 = vpop.f32.mrf.mxu0
    %v2504 = vadd.f32 0.0, %v2503
    %v2505 = vpop.f32.mrf.mxu0
    %2506 = vmatprep.mubr.f32.mxu0 0.0
    %2507 = vmatmul.mubr.f32.gmra.mxu0 %v2430
    %v2508 = vpop.f32.mrf.mxu0
    %v2509 = vadd.f32 0.0, %v2508
    %v2510 = vpop.f32.mrf.mxu0
    %2511 = vdwg.mxu0
    %2515 = vrot.lane.b32.xlu0 %v2499, 32
    %v2516 = vpop.permute.xlu0 %2515
    %2517 = vrot.lane.b32.xlu0 %v2504, 32
    %v2518 = vpop.permute.xlu0 %2517
    %2519 = vrot.lane.b32.xlu0 %v2509, 32
    %v2520 = vpop.permute.xlu0 %2519
    %v2524 = vadd.f32 %v2367, %v2516
    %v2525 = vadd.f32 %v2368, %v2518
    %v2526 = vadd.f32 %v2369, %v2520
    %v2527 = vtanh.pop %v2524
    %v2528 = vtanh.pop %v2525
    %v2529 = vtanh.pop %v2526
    %v2530 = vld [vmem:[%s3 + $0x30] sm:$0xff]
    %v2531 = vld [vmem:[%s3 + $0x68] sm:$0xff]
    %v2532 = vld [vmem:[%s3 + $0xa0] sm:$0xff]
    %v2533 = vld [vmem:[%s3 + $0xd8] sm:$0xff]
    %v2534 = vld [vmem:[%s5 + $0x5] ss:$0 sm:$0xff]
    %2538 = vrot.lane.b32.xlu0 %v2527, 96
    %v2539 = vpop.permute.xlu0 %2538
    %2540 = vrot.lane.b32.xlu0 %v2528, 96
    %v2541 = vpop.permute.xlu0 %2540
    %2542 = vrot.lane.b32.xlu0 %v2529, 96
    %v2543 = vpop.permute.xlu0 %2542
    %v2544 = vsel %vm132, %v2539, 0
    %v2546 = vsel %vm132, %v2541, 0
    %v2548 = vsel %vm132, %v2543, 0
    %2550 = vmatprep.subr.mxu0 0.0
    %2551 = vmatpush1.msra.mxu0 0.0
    %2552 = vmatprep.subr.mxu0 0.0
    %2553 = vmatpush1.msra.mxu0 0.0
    %2554 = vmatprep.subr.mxu0 0.0
    %2555 = vmatpush1.msra.mxu0 0.0
    %2556 = vmatprep.subr.mxu0 0.0
    %2557 = vmatpush1.msra.mxu0 0.0
    %2558 = vmatprep.subr.mxu0 0.0
    %2559 = vmatpush1.msra.mxu0 0.0
    %2560 = vmatprep.subr.mxu0 0.0
    %2561 = vmatpush1.msra.mxu0 0.0
    %2562 = vmatprep.subr.mxu0 0.0
    %2563 = vmatpush1.msra.mxu0 0.0
    %2564 = vmatprep.subr.mxu0 0.0
    %2565 = vmatpush1.msra.mxu0 0.0
    %2566 = vmatprep.subr.mxu0 0.0
    %2567 = vmatpush1.msra.mxu0 0.0
    %2568 = vmatprep.subr.mxu0 0.0
    %2569 = vmatpush1.msra.mxu0 0.0
    %2570 = vmatprep.subr.mxu0 0.0
    %2571 = vmatpush1.msra.mxu0 0.0
    %2572 = vmatprep.subr.mxu0 0.0
    %2573 = vmatpush1.msra.mxu0 0.0
    %2574 = vmatprep.subr.mxu0 0.0
    %2575 = vmatpush1.msra.mxu0 %v2533
    %2576 = vmatprep.subr.mxu0 0.0
    %2577 = vmatpush1.msra.mxu0 %v2532
    %2578 = vmatprep.subr.mxu0 0.0
    %2579 = vmatpush1.msra.mxu0 %v2531
    %2580 = vmatprep.subr.mxu0 0.0
    %2581 = vmatpush1.msra.mxu0 %v2530
    %2582 = vmatprep.subr.mxu0 0.0
    %2583 = vmatpush2.msra.mxu0 0.0
    %2584 = vmatprep.subr.mxu0 0.0
    %2585 = vmatpush2.msra.mxu0 0.0
    %2586 = vmatprep.subr.mxu0 0.0
    %2587 = vmatpush2.msra.mxu0 0.0
    %2588 = vmatprep.subr.mxu0 0.0
    %2589 = vmatpush2.msra.mxu0 0.0
    %2590 = vmatprep.subr.mxu0 0.0
    %2591 = vmatpush2.msra.mxu0 0.0
    %2592 = vmatprep.subr.mxu0 0.0
    %2593 = vmatpush2.msra.mxu0 0.0
    %2594 = vmatprep.subr.mxu0 0.0
    %2595 = vmatpush2.msra.mxu0 0.0
    %2596 = vmatprep.subr.mxu0 0.0
    %2597 = vmatpush2.msra.mxu0 0.0
    %2598 = vmatprep.subr.mxu0 0.0
    %2599 = vmatpush2.msra.mxu0 0.0
    %2600 = vmatprep.subr.mxu0 0.0
    %2601 = vmatpush2.msra.mxu0 0.0
    %2602 = vmatprep.subr.mxu0 0.0
    %2603 = vmatpush2.msra.mxu0 0.0
    %2604 = vmatprep.subr.mxu0 0.0
    %2605 = vmatpush2.msra.mxu0 0.0
    %2606 = vmatprep.subr.mxu0 0.0
    %2607 = vmatpush2.msra.mxu0 0.0
    %2608 = vmatprep.subr.mxu0 0.0
    %2609 = vmatpush2.msra.mxu0 0.0
    %2610 = vmatprep.subr.mxu0 0.0
    %2611 = vmatpush2.msra.mxu0 0.0
    %2612 = vmatprep.subr.mxu0 0.0
    %2613 = vmatpush2.msra.mxu0 0.0
    %2614 = vmatprep.mubr.f32.mxu0 0.0
    %2615 = vmatmul.mubr.f32.gmra.mxu0 %v2544
    %v2616 = vpop.f32.mrf.mxu0
    %v2617 = vadd.f32 %v2534, %v2616
    %v2618 = vpop.f32.mrf.mxu0
    %2619 = vmatprep.mubr.f32.mxu0 0.0
    %2620 = vmatmul.mubr.f32.gmra.mxu0 %v2546
    %v2621 = vpop.f32.mrf.mxu0
    %v2622 = vadd.f32 %v2534, %v2621
    %v2623 = vpop.f32.mrf.mxu0
    %2624 = vmatprep.mubr.f32.mxu0 0.0
    %2625 = vmatmul.mubr.f32.gmra.mxu0 %v2548
    %v2626 = vpop.f32.mrf.mxu0
    %v2627 = vadd.f32 %v2534, %v2626
    %v2628 = vpop.f32.mrf.mxu0
    %2629 = vdwg.mxu0
    %2630 = vst [vmem:[#allocation3] sm:$0xff] %v2617
    %2631 = vst [vmem:[#allocation3 + $0x8] sm:$0xff] %v2622
    %2632 = vst [vmem:[#allocation3 + $0x10] sm:$0xff] %v2627
    // Predicated region
    $region26: #{att_gate_decoder_forward.1} parent=1 // pred_check
      _
    $region27: #{att_gate_decoder_forward.1} parent=1 // pred_check_branch
      %2634 = sbr.rel (0) target = $region29
    $region28: #{att_gate_decoder_forward.1} parent=1 // pred_region
      %s2636 = ssub.s32 384, 384
      %2637 = vsyncadd [#allocation4], %s2636
      %s2638 = sshll.u32 [#allocation3], 4
      %s2639 = int_to_ptr.vmem [resolvable:$true] %s2638
      %2644 = dma.vmem_to_hbm [thread:$0]  %s2639, 384, %s6, [#allocation4], 128, 128, 8
    $region29: #{att_gate_decoder_forward.1} parent=1 // pred_fallthru
      _
    // Predicated region
    $region30: #{att_gate_decoder_forward.1} parent=1 // pred_check
      _
    $region31: #{att_gate_decoder_forward.1} parent=1 // pred_check_branch
      %2646 = sbr.rel (0) target = $region33
    $region32: #{att_gate_decoder_forward.1} parent=1 // pred_region
      %2647 = dma.done [#allocation4], 384
    $region33: #{att_gate_decoder_forward.1} parent=1 // pred_fallthru
      _
    %2648 = vsyncpa [#allocation4], 1

</llo_original>
